<compile_context>
chip_gen: v7x
topology: tpu7x:2x2x1
jax: 0.10.0
libtpu: 0.0.40
codegen_flags: <defaults>
</compile_context>

<pallas_src>
import functools

import jax
import jax.numpy as jnp
import numpy as np
from jax.experimental import pallas as pl
from jax.experimental.pallas import tpu as pltpu

LANE = 128     # TPU lane width
SUBLANE = 8    # TPU sublane width


def _round_up(x, m):
    return ((x + m - 1) // m) * m


def _pick_tile(b_lab, b_unlab, max_tile=128):
    # Batch tile: multiple of 8 sublanes, up to 128 rows (fills the MXU M dim).
    seg = max(b_lab, b_unlab, 1)
    return min(max_tile, _round_up(seg, SUBLANE))


# ----------------------------------------------------------------------------
# Single fused Pallas kernel: the whole eval-mode forward for one batch tile.
# ----------------------------------------------------------------------------
def _fused_head_kernel(lab1_ref, unlab1_ref, lab2_ref, unlab2_ref, *refs,
                       n_cls_layers, n_con_layers, cls_acts, con_acts,
                       n_lab_tiles, pack_embed):
    idx = 0
    cls_refs = refs[idx: idx + 2 * n_cls_layers]
    idx += 2 * n_cls_layers
    con_hidden_refs = refs[idx: idx + 2 * (n_con_layers - 1)]
    idx += 2 * (n_con_layers - 1)
    n_final = 4 if pack_embed else 2
    con_final_refs = refs[idx: idx + n_final]
    idx += n_final
    logits_ref, embed_ref = refs[idx:]

    def mlp(x, wrefs, acts):
        # bf16 MXU operands, f32 accumulation; bias/ReLU in f32.
        for li, act in enumerate(acts):
            w = wrefs[2 * li][...]                 # bf16 (K, N)
            b = wrefs[2 * li + 1][...]             # f32  (1, N)
            x = jnp.dot(x.astype(jnp.bfloat16), w,
                        preferred_element_type=jnp.float32) + b
            if act:                                # ReLU (Dropout is id in eval)
                x = jnp.maximum(x, 0.0)
        return x

    # Grid steps [0, n_lab_tiles) carry labeled rows, the rest unlabeled rows.
    is_lab = pl.program_id(0) < n_lab_tiles
    x1 = jnp.where(is_lab, lab1_ref[...], unlab1_ref[...]).astype(jnp.float32)
    x2 = jnp.where(is_lab, lab2_ref[...], unlab2_ref[...]).astype(jnp.float32)

    # Merged multi-classifier head (view1 rows only) -> one lane-dense slab.
    logits_ref[...] = mlp(x1, cls_refs, cls_acts).astype(logits_ref.dtype)

    # Contrastive head + fused F.normalize(dim=-1).  Padded lanes of the final
    # layer are exactly zero and do not perturb the norm.
    hidden_acts = con_acts[:-1]

    def embed(x, w_ref, b_ref):
        h = mlp(x, con_hidden_refs, hidden_acts)
        e = jnp.dot(h.astype(jnp.bfloat16), w_ref[...],
                    preferred_element_type=jnp.float32) + b_ref[...]
        ssq = jnp.sum(e * e, axis=-1, keepdims=True)     # XLU row-reduce
        inv = jax.lax.rsqrt(jnp.maximum(ssq, 1e-24))     # == 1/max(||e||,1e-12)
        return e * inv

    if pack_embed:
        # Final layer A places the embedding at lanes [0:E), final layer B at
        # lanes [E:2E); supports are disjoint so addition == packing.
        e1 = embed(x1, con_final_refs[0], con_final_refs[1])
        e2 = embed(x2, con_final_refs[2], con_final_refs[3])
        embed_ref[...] = (e1 + e2).astype(embed_ref.dtype)
    else:
        e1 = embed(x1, con_final_refs[0], con_final_refs[1])
        e2 = embed(x2, con_final_refs[0], con_final_refs[1])
        embed_ref[...] = jnp.concatenate([e1, e2], axis=-1).astype(embed_ref.dtype)


def fused_head_pallas(lab1, unlab1, lab2, unlab2, params, cls_acts, con_acts,
                      tile_m):
    B_lab, D = lab1.shape
    B_unlab = unlab1.shape[0]
    assert B_lab > 0 and B_unlab > 0

    n_lab_tiles = int(pl.cdiv(B_lab, tile_m))
    n_unlab_tiles = int(pl.cdiv(B_unlab, tile_m))
    Lp, Up = n_lab_tiles * tile_m, n_unlab_tiles * tile_m
    n_tiles = n_lab_tiles + n_unlab_tiles

    def pad_rows(x, rows):
        if x.shape[0] == rows:       # no-op at aligned batch sizes
            return x
        return jnp.pad(x, ((0, rows - x.shape[0]), (0, 0)))

    lab1p, lab2p = pad_rows(lab1, Lp), pad_rows(lab2, Lp)
    unlab1p, unlab2p = pad_rows(unlab1, Up), pad_rows(unlab2, Up)

    cls_layers = params["cls"]
    con_hidden = params["con_hidden"]
    con_final = params["con_final"]
    pack_embed = len(con_final) == 4
    n_cls, n_con = len(cls_layers), len(con_hidden) + 1

    flat = []
    for layer in list(cls_layers) + list(con_hidden):
        flat.append(layer["w"])
        flat.append(layer["b"])
    flat += list(con_final)

    nc_pad = cls_layers[-1]["w"].shape[1]     # lane-padded merged n_class
    e_pad = con_final[0].shape[1]             # lane-padded embed width
    e_out = e_pad if pack_embed else 2 * e_pad

    kernel = functools.partial(
        _fused_head_kernel,
        n_cls_layers=n_cls, n_con_layers=n_con,
        cls_acts=tuple(cls_acts), con_acts=tuple(con_acts),
        n_lab_tiles=n_lab_tiles, pack_embed=pack_embed)

    # Labeled rows own grid steps [0, n_lab_tiles); unlabeled rows the rest.
    # Out-of-segment block indices are clamped (the redundant tile DMA is
    # discarded by the in-kernel scalar select).
    def lab_map(i):
        return (jnp.minimum(i, n_lab_tiles - 1), 0)

    def unlab_map(i):
        return (jnp.clip(i - n_lab_tiles, 0, n_unlab_tiles - 1), 0)

    def const_map(i):
        return (0, 0)

    data_spec_lab = pl.BlockSpec((tile_m, D), lab_map)
    data_spec_unlab = pl.BlockSpec((tile_m, D), unlab_map)
    # Weights/biases: constant index_map -> fetched once, VMEM-resident across
    # all batch tiles.
    # TODO(synk): pipeline_mode=pl.Buffered(1) would drop the unused second
    # buffer of these constant-index operands; skipped here (weights are tiny).
    weight_specs = [pl.BlockSpec(a.shape, const_map) for a in flat]

    out_shape = (
        jax.ShapeDtypeStruct((n_tiles * tile_m, nc_pad), lab1.dtype),
        jax.ShapeDtypeStruct((n_tiles * tile_m, e_out), lab1.dtype),
    )
    out_specs = (
        pl.BlockSpec((tile_m, nc_pad), lambda i: (i, 0)),
        pl.BlockSpec((tile_m, e_out), lambda i: (i, 0)),
    )

    # Advisory cost estimate so XLA can overlap surrounding ops with the call.
    rows = n_tiles * tile_m
    mm = lambda w: 2 * int(w.shape[0]) * int(w.shape[1])
    cls_mm = sum(mm(l["w"]) for l in cls_layers)
    con_mm = sum(mm(l["w"]) for l in con_hidden) + mm(con_final[0])
    flops = rows * (cls_mm + 2 * con_mm)
    bytes_accessed = (4 * rows * D * lab1.dtype.itemsize
                      + sum(int(a.size) * a.dtype.itemsize for a in flat)
                      + rows * (nc_pad + e_out) * lab1.dtype.itemsize)
    cost = pl.CostEstimate(flops=int(flops), transcendentals=int(2 * rows),
                           bytes_accessed=int(bytes_accessed))

    return pl.pallas_call(
        kernel,
        out_shape=out_shape,
        grid=(n_tiles,),
        in_specs=[data_spec_lab, data_spec_unlab, data_spec_lab, data_spec_unlab]
                 + weight_specs,
        out_specs=out_specs,
        cost_estimate=cost,
        compiler_params=pltpu.CompilerParams(
            dimension_semantics=("parallel",),     # batch tiles are independent
            vmem_limit_bytes=32 * 1024 * 1024),    # explicit, safe on v5e/v6e/v7x
    )(lab1p, unlab1p, lab2p, unlab2p, *flat)


# ----------------------------------------------------------------------------
# Parameter construction (deterministic, in-script) and weight re-layout
# ----------------------------------------------------------------------------
def _init_linear(key, in_dim, out_dim):
    # Weights stored transposed from PyTorch, i.e. (in_dim, out_dim).
    kw, kb = jax.random.split(key)
    bound = 1.0 / np.sqrt(in_dim)
    w = jax.random.uniform(kw, (in_dim, out_dim), jnp.float32, -bound, bound)
    b = jax.random.uniform(kb, (out_dim,), jnp.float32, -bound, bound)
    return {"w": w, "b": b}


def make_classifier_params(key, input_dim, hidden_dims, n_class):
    layers, in_dim = [], input_dim
    for dim in hidden_dims:
        key, sub = jax.random.split(key)
        layers.append(_init_linear(sub, in_dim, dim))
        in_dim = dim
    key, sub = jax.random.split(key)
    layers.append(_init_linear(sub, in_dim, n_class))
    return layers


def make_contrastive_params(key, input_dim, hidden_dims, embed_dim):
    layers, in_dim = [], input_dim
    for dim in hidden_dims:
        key, sub = jax.random.split(key)
        layers.append(_init_linear(sub, in_dim, dim))
        in_dim = dim
    key, sub = jax.random.split(key)
    layers.append(_init_linear(sub, in_dim, embed_dim))
    return layers


def classifier_acts(hidden_dims):
    # [Linear, Dropout(id), ReLU]* then Linear
    return tuple([True] * len(hidden_dims) + [False])


def contrastive_acts(hidden_dims):
    # Linear(+ReLU except after last hidden) then Linear
    return tuple([i < len(hidden_dims) - 1 for i in range(len(hidden_dims))] + [False])


def _block_diag(mats):
    rows = sum(m.shape[0] for m in mats)
    cols = sum(m.shape[1] for m in mats)
    out = jnp.zeros((rows, cols), mats[0].dtype)
    r = c = 0
    for m in mats:
        out = out.at[r:r + m.shape[0], c:c + m.shape[1]].set(m)
        r += m.shape[0]
        c += m.shape[1]
    return out


def merge_classifiers(classifier_params):
    """Merge per-classifier MLPs into one MLP: column-concat first layer
    (shared input), block-diagonal deeper layers, concatenated biases."""
    n_layers = len(classifier_params[0])
    merged = []
    for li in range(n_layers):
        ws = [p[li]["w"] for p in classifier_params]
        bs = [p[li]["b"] for p in classifier_params]
        w = jnp.concatenate(ws, axis=1) if li == 0 else _block_diag(ws)
        b = jnp.concatenate(bs)
        merged.append({"w": w, "b": b})
    return merged


def pad_layer_chain(layers, lane=LANE):
    """Zero-pad every layer's output dim (and the next layer's input dim) to a
    lane multiple.  Zero rows/cols contribute exactly 0, so the padded MLP
    matches the original on its real lanes and every operand is lane-dense."""
    padded, prev_out = [], None
    for layer in layers:
        w, b = layer["w"], layer["b"]
        if prev_out is not None and prev_out > w.shape[0]:
            w = jnp.pad(w, ((0, prev_out - w.shape[0]), (0, 0)))
        out_pad = _round_up(w.shape[1], lane)
        if out_pad > w.shape[1]:
            w = jnp.pad(w, ((0, 0), (0, out_pad - w.shape[1])))
            b = jnp.pad(b, ((0, out_pad - b.shape[0]),))
        padded.append({"w": w, "b": b})
        prev_out = out_pad
    return padded


def prepare_params(classifier_params, contrast_params, embed_dim, lane=LANE):
    """One-time re-layout: merge classifiers, lane-pad all dims, cast weights
    to bf16 (biases stay f32), and build the lane-shifted duplicate of the
    contrastive final layer used to pack e1/e2 into a single output slab."""
    merged_cls = pad_layer_chain(merge_classifiers(classifier_params), lane)
    con = pad_layer_chain(list(contrast_params), lane)

    def finish(layer):
        return {"w": layer["w"].astype(jnp.bfloat16),
                "b": layer["b"].astype(jnp.float32).reshape(1, -1)}

    cls_out = [finish(l) for l in merged_cls]
    con_hidden = [finish(l) for l in con[:-1]]

    fw, fb = con[-1]["w"], con[-1]["b"]
    e_pad = fw.shape[1]
    pack_embed = 2 * embed_dim <= e_pad
    w_a = fw.astype(jnp.bfloat16)
    b_a = fb.astype(jnp.float32).reshape(1, -1)
    if pack_embed:
        w_b = jnp.zeros_like(fw).at[:, embed_dim:2 * embed_dim].set(
            fw[:, :embed_dim]).astype(jnp.bfloat16)
        b_b = jnp.zeros_like(fb).at[embed_dim:2 * embed_dim].set(
            fb[:embed_dim]).astype(jnp.float32).reshape(1, -1)
        con_final = [w_a, b_a, w_b, b_b]
    else:
        con_final = [w_a, b_a]
    return {"cls": cls_out, "con_hidden": con_hidden, "con_final": con_final}


# ----------------------------------------------------------------------------
# Forward (eval mode), fully jitted, one pallas_call per call
# ----------------------------------------------------------------------------
def build_forward(n_classes, embed_dim, cls_acts, con_acts):
    n_classes = tuple(n_classes)

    @jax.jit
    def forward(params, labeled_input1, labeled_input2,
                unlabeled_input1, unlabeled_input2):
        b_lab = labeled_input1.shape[0]
        b_unlab = unlabeled_input1.shape[0]
        tile_m = _pick_tile(b_lab, b_unlab)
        lp = _round_up(b_lab, tile_m)   # unlabeled rows start at this padded row

        logits_slab, embed_slab = fused_head_pallas(
            labeled_input1, unlabeled_input1, labeled_input2, unlabeled_input2,
            params, cls_acts, con_acts, tile_m)

        # Split the merged logits slab back to the PyTorch output layout:
        # [clf1 labeled, clf1 unlabeled, clf2 labeled, clf2 unlabeled, ...]
        logits_list, off = [], 0
        for n_class in n_classes:
            logits_list.append(logits_slab[:b_lab, off:off + n_class])
            logits_list.append(logits_slab[lp:lp + b_unlab, off:off + n_class])
            off += n_class

        pack_embed = len(params["con_final"]) == 4
        e_pad = params["con_final"][0].shape[1]
        e2_off = embed_dim if pack_embed else e_pad

        e_rows = jnp.concatenate(
            [embed_slab[:b_lab], embed_slab[lp:lp + b_unlab]], axis=0)
        features = jnp.stack(
            [e_rows[:, :embed_dim], e_rows[:, e2_off:e2_off + embed_dim]], axis=1)
        bt = b_lab + b_unlab
        features1 = features[:bt]      # full batch (as in the PyTorch code)
        features2 = features[bt:]      # empty slice (reproduces original semantics)

        return tuple(logits_list) + (features1, features2), {}

    return forward


# ----------------------------------------------------------------------------
# Pure-JAX reference (unmerged params) for correctness checking
# ----------------------------------------------------------------------------
def reference_forward(classifier_params, contrast_params, cls_acts, con_acts,
                      lab1, lab2, unlab1, unlab2, matmul_dtype=jnp.float32):
    def mlp(layers, acts, x):
        for layer, act in zip(layers, acts):
            y = jnp.dot(x.astype(matmul_dtype), layer["w"].astype(matmul_dtype),
                        preferred_element_type=jnp.float32) + layer["b"]
            x = jnp.maximum(y, 0.0) if act else y
        return x

    logits_list = []
    for cls in classifier_params:
        logits_list.append(mlp(cls, cls_acts, lab1))
        logits_list.append(mlp(cls, cls_acts, unlab1))

    view1 = jnp.concatenate([lab1, unlab1], axis=0)
    view2 = jnp.concatenate([lab2, unlab2], axis=0)
    e1 = mlp(contrast_params, con_acts, view1)
    e2 = mlp(contrast_params, con_acts, view2)

    def normalize(x):
        n = jnp.maximum(jnp.sqrt(jnp.sum(x * x, -1, keepdims=True)), 1e-12)
        return x / n

    features = jnp.stack([normalize(e1), normalize(e2)], axis=1)
    bt = view1.shape[0]
    return logits_list + [features[:bt], features[bt:]]


# ----------------------------------------------------------------------------
# Main
# ----------------------------------------------------------------------------
if __name__ == "__main__":
    key = jax.random.PRNGKey(0)

    # Module hyper-parameters (small, consistent with the module's __init__).
    n_classes = [4, 3]
    input_dim = 32
    cls_hidden_dims = [32]
    embed_dim = 16
    contrast_hidden_dims = [32, 32]

    cls_acts = classifier_acts(cls_hidden_dims)
    con_acts = contrastive_acts(contrast_hidden_dims)

    # Deterministic parameters.
    classifiers = []
    for n_class in n_classes:
        key, sub = jax.random.split(key)
        classifiers.append(make_classifier_params(sub, input_dim, cls_hidden_dims, n_class))
    key, sub = jax.random.split(key)
    contrast = make_contrastive_params(sub, input_dim, contrast_hidden_dims, embed_dim)

    # One-time weight re-layout (outside the jitted forward).
    params = prepare_params(classifiers, contrast, embed_dim)

    # Deterministic inputs: labeled batch 2, unlabeled batch 2, two views each.
    key, ka, kb, kc, kd = jax.random.split(key, 5)
    labeled_input1 = jax.random.normal(ka, (2, input_dim), jnp.float32)
    labeled_input2 = jax.random.normal(kb, (2, input_dim), jnp.float32)
    unlabeled_input1 = jax.random.normal(kc, (2, input_dim), jnp.float32)
    unlabeled_input2 = jax.random.normal(kd, (2, input_dim), jnp.float32)

    forward = build_forward(n_classes, embed_dim, cls_acts, con_acts)
    feat_list, loss_dict = forward(params,
                                   labeled_input1, labeled_input2,
                                   unlabeled_input1, unlabeled_input2)
    jax.block_until_ready(feat_list)

    # Shape checks (match the PyTorch module in eval mode).
    assert feat_list[0].shape == (2, n_classes[0])      # labeled logits, classifier 1
    assert feat_list[1].shape == (2, n_classes[0])      # unlabeled logits, classifier 1
    assert feat_list[2].shape == (2, n_classes[1])      # labeled logits, classifier 2
    assert feat_list[3].shape == (2, n_classes[1])      # unlabeled logits, classifier 2
    assert feat_list[4].shape == (4, 2, embed_dim)      # features1 (full batch)
    assert feat_list[5].shape == (0, 2, embed_dim)      # features2 (empty, as in PyTorch)
    assert loss_dict == {}

    # Tight check against a bf16-matched reference (same MXU quantization).
    ref_bf16 = reference_forward(classifiers, contrast, cls_acts, con_acts,
                                 labeled_input1, labeled_input2,
                                 unlabeled_input1, unlabeled_input2,
                                 matmul_dtype=jnp.bfloat16)
    for got, want in zip(feat_list, ref_bf16):
        np.testing.assert_allclose(np.asarray(got), np.asarray(want),
                                   rtol=5e-3, atol=5e-3)

    # Loose sanity check against full-f32 math (covers bf16 quantization).
    ref_f32 = reference_forward(classifiers, contrast, cls_acts, con_acts,
                                labeled_input1, labeled_input2,
                                unlabeled_input1, unlabeled_input2,
                                matmul_dtype=jnp.float32)
    for got, want in zip(feat_list, ref_f32):
        np.testing.assert_allclose(np.asarray(got), np.asarray(want),
                                   rtol=2e-2, atol=2e-2)

    print("KERNEL_OK")
</pallas_src>

<mosaic_0001>
module attributes {stable_mosaic.version = 11 : i64} {
  func.func @_fused_head_kernel(%arg0: i32, %arg1: memref<8x32xf32, #tpu.memory_space<vmem>>, %arg2: memref<8x32xf32, #tpu.memory_space<vmem>>, %arg3: memref<8x32xf32, #tpu.memory_space<vmem>>, %arg4: memref<8x32xf32, #tpu.memory_space<vmem>>, %arg5: memref<32x128xbf16, #tpu.memory_space<vmem>>, %arg6: memref<1x128xf32, #tpu.memory_space<vmem>>, %arg7: memref<128x128xbf16, #tpu.memory_space<vmem>>, %arg8: memref<1x128xf32, #tpu.memory_space<vmem>>, %arg9: memref<32x128xbf16, #tpu.memory_space<vmem>>, %arg10: memref<1x128xf32, #tpu.memory_space<vmem>>, %arg11: memref<128x128xbf16, #tpu.memory_space<vmem>>, %arg12: memref<1x128xf32, #tpu.memory_space<vmem>>, %arg13: memref<128x128xbf16, #tpu.memory_space<vmem>>, %arg14: memref<1x128xf32, #tpu.memory_space<vmem>>, %arg15: memref<128x128xbf16, #tpu.memory_space<vmem>>, %arg16: memref<1x128xf32, #tpu.memory_space<vmem>>, %arg17: memref<8x128xf32, #tpu.memory_space<vmem>>, %arg18: memref<8x128xf32, #tpu.memory_space<vmem>>) attributes {dimension_semantics = [#tpu.dimension_semantics<parallel>], iteration_bounds = array<i64: 2>, scalar_prefetch = 0 : i64, scratch_operands = 0 : i64, tpu.core_type = #tpu.core_type<tc>, window_params = [{transform_indices = @transform_0, window_bounds = array<i64: 8, 32>}, {transform_indices = @transform_1, window_bounds = array<i64: 8, 32>}, {transform_indices = @transform_2, window_bounds = array<i64: 8, 32>}, {transform_indices = @transform_3, window_bounds = array<i64: 8, 32>}, {pipeline_mode = #tpu.pipeline_mode<synchronous>, transform_indices = @transform_4, window_bounds = array<i64: 32, 128>}, {pipeline_mode = #tpu.pipeline_mode<synchronous>, transform_indices = @transform_5, window_bounds = array<i64: 1, 128>}, {pipeline_mode = #tpu.pipeline_mode<synchronous>, transform_indices = @transform_6, window_bounds = array<i64: 128, 128>}, {pipeline_mode = #tpu.pipeline_mode<synchronous>, transform_indices = @transform_7, window_bounds = array<i64: 1, 128>}, {pipeline_mode = #tpu.pipeline_mode<synchronous>, transform_indices = @transform_8, window_bounds = array<i64: 32, 128>}, {pipeline_mode = #tpu.pipeline_mode<synchronous>, transform_indices = @transform_9, window_bounds = array<i64: 1, 128>}, {pipeline_mode = #tpu.pipeline_mode<synchronous>, transform_indices = @transform_10, window_bounds = array<i64: 128, 128>}, {pipeline_mode = #tpu.pipeline_mode<synchronous>, transform_indices = @transform_11, window_bounds = array<i64: 1, 128>}, {pipeline_mode = #tpu.pipeline_mode<synchronous>, transform_indices = @transform_12, window_bounds = array<i64: 128, 128>}, {pipeline_mode = #tpu.pipeline_mode<synchronous>, transform_indices = @transform_13, window_bounds = array<i64: 1, 128>}, {pipeline_mode = #tpu.pipeline_mode<synchronous>, transform_indices = @transform_14, window_bounds = array<i64: 128, 128>}, {pipeline_mode = #tpu.pipeline_mode<synchronous>, transform_indices = @transform_15, window_bounds = array<i64: 1, 128>}, {transform_indices = @transform_16, window_bounds = array<i64: 8, 128>}, {transform_indices = @transform_17, window_bounds = array<i64: 8, 128>}]} {
    %c1_i32 = arith.constant 1 : i32
    %0 = arith.cmpi slt, %arg0, %c1_i32 : i32
    %c0 = arith.constant 0 : index
    %c0_0 = arith.constant 0 : index
    %1 = vector.load %arg1[%c0, %c0_0] : memref<8x32xf32, #tpu.memory_space<vmem>>, vector<8x32xf32>
    %c0_1 = arith.constant 0 : index
    %c0_2 = arith.constant 0 : index
    %2 = vector.load %arg2[%c0_1, %c0_2] : memref<8x32xf32, #tpu.memory_space<vmem>>, vector<8x32xf32>
    %3 = arith.select %0, %1, %2 : vector<8x32xf32>
    %c0_3 = arith.constant 0 : index
    %c0_4 = arith.constant 0 : index
    %4 = vector.load %arg3[%c0_3, %c0_4] : memref<8x32xf32, #tpu.memory_space<vmem>>, vector<8x32xf32>
    %c0_5 = arith.constant 0 : index
    %c0_6 = arith.constant 0 : index
    %5 = vector.load %arg4[%c0_5, %c0_6] : memref<8x32xf32, #tpu.memory_space<vmem>>, vector<8x32xf32>
    %6 = arith.select %0, %4, %5 : vector<8x32xf32>
    %c0_7 = arith.constant 0 : index
    %c0_8 = arith.constant 0 : index
    %7 = vector.load %arg5[%c0_7, %c0_8] : memref<32x128xbf16, #tpu.memory_space<vmem>>, vector<32x128xbf16>
    %c0_9 = arith.constant 0 : index
    %c0_10 = arith.constant 0 : index
    %8 = vector.load %arg6[%c0_9, %c0_10] : memref<1x128xf32, #tpu.memory_space<vmem>>, vector<1x128xf32>
    %9 = arith.truncf %3 : vector<8x32xf32> to vector<8x32xbf16>
    %cst = arith.constant dense<0.000000e+00> : vector<8x128xf32>
    %10 = tpu.matmul %9, %7, %cst {dimension_numbers = #tpu.dot_dimension_numbers<[1], [0], [0], [1], [0, 0, 1, 1], [], []>} : vector<8x32xbf16>, vector<32x128xbf16>, vector<8x128xf32> -> vector<8x128xf32>
    %11 = vector.broadcast %8 : vector<1x128xf32> to vector<8x128xf32>
    %12 = arith.addf %10, %11 : vector<8x128xf32>
    %cst_11 = arith.constant 0.000000e+00 : f32
    %13 = vector.broadcast %cst_11 : f32 to vector<8x128xf32>
    %14 = arith.maximumf %12, %13 : vector<8x128xf32>
    %c0_12 = arith.constant 0 : index
    %c0_13 = arith.constant 0 : index
    %15 = vector.load %arg7[%c0_12, %c0_13] : memref<128x128xbf16, #tpu.memory_space<vmem>>, vector<128x128xbf16>
    %c0_14 = arith.constant 0 : index
    %c0_15 = arith.constant 0 : index
    %16 = vector.load %arg8[%c0_14, %c0_15] : memref<1x128xf32, #tpu.memory_space<vmem>>, vector<1x128xf32>
    %17 = arith.truncf %14 : vector<8x128xf32> to vector<8x128xbf16>
    %cst_16 = arith.constant dense<0.000000e+00> : vector<8x128xf32>
    %18 = tpu.matmul %17, %15, %cst_16 {dimension_numbers = #tpu.dot_dimension_numbers<[1], [0], [0], [1], [0, 0, 1, 1], [], []>} : vector<8x128xbf16>, vector<128x128xbf16>, vector<8x128xf32> -> vector<8x128xf32>
    %19 = vector.broadcast %16 : vector<1x128xf32> to vector<8x128xf32>
    %20 = arith.addf %18, %19 : vector<8x128xf32>
    %c0_17 = arith.constant 0 : index
    %c0_18 = arith.constant 0 : index
    %21 = vector.load %arg17[%c0_17, %c0_18] : memref<8x128xf32, #tpu.memory_space<vmem>>, vector<8x128xf32>
    tpu.vector_store %arg17[%c0_17, %c0_18], %20 {strides = array<i32>} : memref<8x128xf32, #tpu.memory_space<vmem>>, vector<8x128xf32>,
    %c0_19 = arith.constant 0 : index
    %c0_20 = arith.constant 0 : index
    %22 = vector.load %arg9[%c0_19, %c0_20] : memref<32x128xbf16, #tpu.memory_space<vmem>>, vector<32x128xbf16>
    %c0_21 = arith.constant 0 : index
    %c0_22 = arith.constant 0 : index
    %23 = vector.load %arg10[%c0_21, %c0_22] : memref<1x128xf32, #tpu.memory_space<vmem>>, vector<1x128xf32>
    %24 = arith.truncf %3 : vector<8x32xf32> to vector<8x32xbf16>
    %cst_23 = arith.constant dense<0.000000e+00> : vector<8x128xf32>
    %25 = tpu.matmul %24, %22, %cst_23 {dimension_numbers = #tpu.dot_dimension_numbers<[1], [0], [0], [1], [0, 0, 1, 1], [], []>} : vector<8x32xbf16>, vector<32x128xbf16>, vector<8x128xf32> -> vector<8x128xf32>
    %26 = vector.broadcast %23 : vector<1x128xf32> to vector<8x128xf32>
    %27 = arith.addf %25, %26 : vector<8x128xf32>
    %cst_24 = arith.constant 0.000000e+00 : f32
    %28 = vector.broadcast %cst_24 : f32 to vector<8x128xf32>
    %29 = arith.maximumf %27, %28 : vector<8x128xf32>
    %c0_25 = arith.constant 0 : index
    %c0_26 = arith.constant 0 : index
    %30 = vector.load %arg11[%c0_25, %c0_26] : memref<128x128xbf16, #tpu.memory_space<vmem>>, vector<128x128xbf16>
    %c0_27 = arith.constant 0 : index
    %c0_28 = arith.constant 0 : index
    %31 = vector.load %arg12[%c0_27, %c0_28] : memref<1x128xf32, #tpu.memory_space<vmem>>, vector<1x128xf32>
    %32 = arith.truncf %29 : vector<8x128xf32> to vector<8x128xbf16>
    %cst_29 = arith.constant dense<0.000000e+00> : vector<8x128xf32>
    %33 = tpu.matmul %32, %30, %cst_29 {dimension_numbers = #tpu.dot_dimension_numbers<[1], [0], [0], [1], [0, 0, 1, 1], [], []>} : vector<8x128xbf16>, vector<128x128xbf16>, vector<8x128xf32> -> vector<8x128xf32>
    %34 = vector.broadcast %31 : vector<1x128xf32> to vector<8x128xf32>
    %35 = arith.addf %33, %34 : vector<8x128xf32>
    %36 = arith.truncf %35 : vector<8x128xf32> to vector<8x128xbf16>
    %c0_30 = arith.constant 0 : index
    %c0_31 = arith.constant 0 : index
    %37 = vector.load %arg13[%c0_30, %c0_31] : memref<128x128xbf16, #tpu.memory_space<vmem>>, vector<128x128xbf16>
    %cst_32 = arith.constant dense<0.000000e+00> : vector<8x128xf32>
    %38 = tpu.matmul %36, %37, %cst_32 {dimension_numbers = #tpu.dot_dimension_numbers<[1], [0], [0], [1], [0, 0, 1, 1], [], []>} : vector<8x128xbf16>, vector<128x128xbf16>, vector<8x128xf32> -> vector<8x128xf32>
    %c0_33 = arith.constant 0 : index
    %c0_34 = arith.constant 0 : index
    %39 = vector.load %arg14[%c0_33, %c0_34] : memref<1x128xf32, #tpu.memory_space<vmem>>, vector<1x128xf32>
    %40 = vector.broadcast %39 : vector<1x128xf32> to vector<8x128xf32>
    %41 = arith.addf %38, %40 : vector<8x128xf32>
    %42 = arith.mulf %41, %41 : vector<8x128xf32>
    %cst_35 = arith.constant dense<0.000000e+00> : vector<8xf32>
    %43 = vector.multi_reduction <add>, %42, %cst_35 [1] : vector<8x128xf32> to vector<8xf32>
    %44 = vector.shape_cast %43 : vector<8xf32> to vector<8x1xf32>
    %cst_36 = arith.constant 1.000000e-24 : f32
    %45 = vector.broadcast %cst_36 : f32 to vector<8x1xf32>
    %46 = arith.maximumf %44, %45 : vector<8x1xf32>
    %47 = math.rsqrt %46 : vector<8x1xf32>
    %48 = vector.broadcast %47 : vector<8x1xf32> to vector<8x128xf32>
    %49 = arith.mulf %41, %48 : vector<8x128xf32>
    %c0_37 = arith.constant 0 : index
    %c0_38 = arith.constant 0 : index
    %50 = vector.load %arg9[%c0_37, %c0_38] : memref<32x128xbf16, #tpu.memory_space<vmem>>, vector<32x128xbf16>
    %c0_39 = arith.constant 0 : index
    %c0_40 = arith.constant 0 : index
    %51 = vector.load %arg10[%c0_39, %c0_40] : memref<1x128xf32, #tpu.memory_space<vmem>>, vector<1x128xf32>
    %52 = arith.truncf %6 : vector<8x32xf32> to vector<8x32xbf16>
    %cst_41 = arith.constant dense<0.000000e+00> : vector<8x128xf32>
    %53 = tpu.matmul %52, %50, %cst_41 {dimension_numbers = #tpu.dot_dimension_numbers<[1], [0], [0], [1], [0, 0, 1, 1], [], []>} : vector<8x32xbf16>, vector<32x128xbf16>, vector<8x128xf32> -> vector<8x128xf32>
    %54 = vector.broadcast %51 : vector<1x128xf32> to vector<8x128xf32>
    %55 = arith.addf %53, %54 : vector<8x128xf32>
    %cst_42 = arith.constant 0.000000e+00 : f32
    %56 = vector.broadcast %cst_42 : f32 to vector<8x128xf32>
    %57 = arith.maximumf %55, %56 : vector<8x128xf32>
    %c0_43 = arith.constant 0 : index
    %c0_44 = arith.constant 0 : index
    %58 = vector.load %arg11[%c0_43, %c0_44] : memref<128x128xbf16, #tpu.memory_space<vmem>>, vector<128x128xbf16>
    %c0_45 = arith.constant 0 : index
    %c0_46 = arith.constant 0 : index
    %59 = vector.load %arg12[%c0_45, %c0_46] : memref<1x128xf32, #tpu.memory_space<vmem>>, vector<1x128xf32>
    %60 = arith.truncf %57 : vector<8x128xf32> to vector<8x128xbf16>
    %cst_47 = arith.constant dense<0.000000e+00> : vector<8x128xf32>
    %61 = tpu.matmul %60, %58, %cst_47 {dimension_numbers = #tpu.dot_dimension_numbers<[1], [0], [0], [1], [0, 0, 1, 1], [], []>} : vector<8x128xbf16>, vector<128x128xbf16>, vector<8x128xf32> -> vector<8x128xf32>
    %62 = vector.broadcast %59 : vector<1x128xf32> to vector<8x128xf32>
    %63 = arith.addf %61, %62 : vector<8x128xf32>
    %64 = arith.truncf %63 : vector<8x128xf32> to vector<8x128xbf16>
    %c0_48 = arith.constant 0 : index
    %c0_49 = arith.constant 0 : index
    %65 = vector.load %arg15[%c0_48, %c0_49] : memref<128x128xbf16, #tpu.memory_space<vmem>>, vector<128x128xbf16>
    %cst_50 = arith.constant dense<0.000000e+00> : vector<8x128xf32>
    %66 = tpu.matmul %64, %65, %cst_50 {dimension_numbers = #tpu.dot_dimension_numbers<[1], [0], [0], [1], [0, 0, 1, 1], [], []>} : vector<8x128xbf16>, vector<128x128xbf16>, vector<8x128xf32> -> vector<8x128xf32>
    %c0_51 = arith.constant 0 : index
    %c0_52 = arith.constant 0 : index
    %67 = vector.load %arg16[%c0_51, %c0_52] : memref<1x128xf32, #tpu.memory_space<vmem>>, vector<1x128xf32>
    %68 = vector.broadcast %67 : vector<1x128xf32> to vector<8x128xf32>
    %69 = arith.addf %66, %68 : vector<8x128xf32>
    %70 = arith.mulf %69, %69 : vector<8x128xf32>
    %cst_53 = arith.constant dense<0.000000e+00> : vector<8xf32>
    %71 = vector.multi_reduction <add>, %70, %cst_53 [1] : vector<8x128xf32> to vector<8xf32>
    %72 = vector.shape_cast %71 : vector<8xf32> to vector<8x1xf32>
    %cst_54 = arith.constant 1.000000e-24 : f32
    %73 = vector.broadcast %cst_54 : f32 to vector<8x1xf32>
    %74 = arith.maximumf %72, %73 : vector<8x1xf32>
    %75 = math.rsqrt %74 : vector<8x1xf32>
    %76 = vector.broadcast %75 : vector<8x1xf32> to vector<8x128xf32>
    %77 = arith.mulf %69, %76 : vector<8x128xf32>
    %78 = arith.addf %49, %77 : vector<8x128xf32>
    %c0_55 = arith.constant 0 : index
    %c0_56 = arith.constant 0 : index
    %79 = vector.load %arg18[%c0_55, %c0_56] : memref<8x128xf32, #tpu.memory_space<vmem>>, vector<8x128xf32>
    tpu.vector_store %arg18[%c0_55, %c0_56], %78 {strides = array<i32>} : memref<8x128xf32, #tpu.memory_space<vmem>>, vector<8x128xf32>,
    return
  }
  func.func @transform_0(%arg0: i32) -> (i32, i32) {
    %c0_i32 = arith.constant 0 : i32
    %0 = arith.minsi %arg0, %c0_i32 : i32
    %c0_i32_0 = arith.constant 0 : i32
    %c0_i32_1 = arith.constant 0 : i32
    return %0, %c0_i32_0 : i32, i32
  }
  func.func @transform_1(%arg0: i32) -> (i32, i32) {
    %c1_i32 = arith.constant 1 : i32
    %0 = arith.subi %arg0, %c1_i32 : i32
    %c0_i32 = arith.constant 0 : i32
    %c0_i32_0 = arith.constant 0 : i32
    %1 = arith.maxsi %c0_i32, %0 : i32
    %2 = arith.minsi %c0_i32_0, %1 : i32
    %c0_i32_1 = arith.constant 0 : i32
    %c0_i32_2 = arith.constant 0 : i32
    return %2, %c0_i32_1 : i32, i32
  }
  func.func @transform_2(%arg0: i32) -> (i32, i32) {
    %c0_i32 = arith.constant 0 : i32
    %0 = arith.minsi %arg0, %c0_i32 : i32
    %c0_i32_0 = arith.constant 0 : i32
    %c0_i32_1 = arith.constant 0 : i32
    return %0, %c0_i32_0 : i32, i32
  }
  func.func @transform_3(%arg0: i32) -> (i32, i32) {
    %c1_i32 = arith.constant 1 : i32
    %0 = arith.subi %arg0, %c1_i32 : i32
    %c0_i32 = arith.constant 0 : i32
    %c0_i32_0 = arith.constant 0 : i32
    %1 = arith.maxsi %c0_i32, %0 : i32
    %2 = arith.minsi %c0_i32_0, %1 : i32
    %c0_i32_1 = arith.constant 0 : i32
    %c0_i32_2 = arith.constant 0 : i32
    return %2, %c0_i32_1 : i32, i32
  }
  func.func @transform_4(%arg0: i32) -> (i32, i32) {
    %c0_i32 = arith.constant 0 : i32
    %c0_i32_0 = arith.constant 0 : i32
    %c0_i32_1 = arith.constant 0 : i32
    return %c0_i32, %c0_i32_0 : i32, i32
  }
  func.func @transform_5(%arg0: i32) -> (i32, i32) {
    %c0_i32 = arith.constant 0 : i32
    %c0_i32_0 = arith.constant 0 : i32
    %c0_i32_1 = arith.constant 0 : i32
    return %c0_i32, %c0_i32_0 : i32, i32
  }
  func.func @transform_6(%arg0: i32) -> (i32, i32) {
    %c0_i32 = arith.constant 0 : i32
    %c0_i32_0 = arith.constant 0 : i32
    %c0_i32_1 = arith.constant 0 : i32
    return %c0_i32, %c0_i32_0 : i32, i32
  }
  func.func @transform_7(%arg0: i32) -> (i32, i32) {
    %c0_i32 = arith.constant 0 : i32
    %c0_i32_0 = arith.constant 0 : i32
    %c0_i32_1 = arith.constant 0 : i32
    return %c0_i32, %c0_i32_0 : i32, i32
  }
  func.func @transform_8(%arg0: i32) -> (i32, i32) {
    %c0_i32 = arith.constant 0 : i32
    %c0_i32_0 = arith.constant 0 : i32
    %c0_i32_1 = arith.constant 0 : i32
    return %c0_i32, %c0_i32_0 : i32, i32
  }
  func.func @transform_9(%arg0: i32) -> (i32, i32) {
    %c0_i32 = arith.constant 0 : i32
    %c0_i32_0 = arith.constant 0 : i32
    %c0_i32_1 = arith.constant 0 : i32
    return %c0_i32, %c0_i32_0 : i32, i32
  }
  func.func @transform_10(%arg0: i32) -> (i32, i32) {
    %c0_i32 = arith.constant 0 : i32
    %c0_i32_0 = arith.constant 0 : i32
    %c0_i32_1 = arith.constant 0 : i32
    return %c0_i32, %c0_i32_0 : i32, i32
  }
  func.func @transform_11(%arg0: i32) -> (i32, i32) {
    %c0_i32 = arith.constant 0 : i32
    %c0_i32_0 = arith.constant 0 : i32
    %c0_i32_1 = arith.constant 0 : i32
    return %c0_i32, %c0_i32_0 : i32, i32
  }
  func.func @transform_12(%arg0: i32) -> (i32, i32) {
    %c0_i32 = arith.constant 0 : i32
    %c0_i32_0 = arith.constant 0 : i32
    %c0_i32_1 = arith.constant 0 : i32
    return %c0_i32, %c0_i32_0 : i32, i32
  }
  func.func @transform_13(%arg0: i32) -> (i32, i32) {
    %c0_i32 = arith.constant 0 : i32
    %c0_i32_0 = arith.constant 0 : i32
    %c0_i32_1 = arith.constant 0 : i32
    return %c0_i32, %c0_i32_0 : i32, i32
  }
  func.func @transform_14(%arg0: i32) -> (i32, i32) {
    %c0_i32 = arith.constant 0 : i32
    %c0_i32_0 = arith.constant 0 : i32
    %c0_i32_1 = arith.constant 0 : i32
    return %c0_i32, %c0_i32_0 : i32, i32
  }
  func.func @transform_15(%arg0: i32) -> (i32, i32) {
    %c0_i32 = arith.constant 0 : i32
    %c0_i32_0 = arith.constant 0 : i32
    %c0_i32_1 = arith.constant 0 : i32
    return %c0_i32, %c0_i32_0 : i32, i32
  }
  func.func @transform_16(%arg0: i32) -> (i32, i32) {
    %c0_i32 = arith.constant 0 : i32
    %c0_i32_0 = arith.constant 0 : i32
    return %arg0, %c0_i32 : i32, i32
  }
  func.func @transform_17(%arg0: i32) -> (i32, i32) {
    %c0_i32 = arith.constant 0 : i32
    %c0_i32_0 = arith.constant 0 : i32
    return %arg0, %c0_i32 : i32, i32
  }
}

</mosaic_0001>

<llo_original>
// kernel: forward.1
$region0: #{forward.1}
  #allocation0 [shape = 'u32[]', space=smem, size = 0x4, offset = 0x4, fixed_abs, tag = 'smem constant byte address 0x4 - core index']
  #allocation1 [shape = 'u32[144,128]{1,0:T(1,128)}', space=vmem, size = 0x12000, scoped, tag = 'internal scratch']
  %s0 = inlined_call_operand.vmem [shape: f32[8,32], index: 0, kind: input, shape index: {}]
  %s1 = inlined_call_operand.vmem [shape: f32[8,32], index: 1, kind: input, shape index: {}]
  %s2 = inlined_call_operand.vmem [shape: f32[8,32], index: 2, kind: input, shape index: {}]
  %s3 = inlined_call_operand.vmem [shape: f32[8,32], index: 3, kind: input, shape index: {}]
  %s4 = inlined_call_operand.vmem [shape: bf16[32,128], index: 4, kind: input, shape index: {}]
  %s5 = inlined_call_operand.vmem [shape: f32[1,128], index: 5, kind: input, shape index: {}]
  %s6 = inlined_call_operand.hbm [shape: bf16[128,128], index: 6, kind: input, shape index: {}]
  %s7 = inlined_call_operand.hbm [shape: f32[1,128], index: 7, kind: input, shape index: {}]
  %s8 = inlined_call_operand.hbm [shape: bf16[32,128], index: 8, kind: input, shape index: {}]
  %s9 = inlined_call_operand.hbm [shape: f32[1,128], index: 9, kind: input, shape index: {}]
  %s10 = inlined_call_operand.vmem [shape: bf16[128,128], index: 10, kind: input, shape index: {}]
  %s11 = inlined_call_operand.hbm [shape: f32[1,128], index: 11, kind: input, shape index: {}]
  %s12 = inlined_call_operand.hbm [shape: bf16[128,128], index: 12, kind: input, shape index: {}]
  %s13 = inlined_call_operand.hbm [shape: f32[1,128], index: 13, kind: input, shape index: {}]
  %s14 = inlined_call_operand.hbm [shape: bf16[128,128], index: 14, kind: input, shape index: {}]
  %s15 = inlined_call_operand.hbm [shape: f32[1,128], index: 15, kind: input, shape index: {}]
  %s16 = inlined_call_operand.vmem [shape: f32[16,128], index: 16, kind: output, shape index: {0}]
  %s17 = inlined_call_operand.vmem [shape: f32[16,128], index: 17, kind: output, shape index: {1}]
  %18 = xla_tuple %s16, %s17
  %s19 = sld [smem:[#allocation0]]
  $region141: #{forward.1} parent=0
    _
  %s21 = ssub.s32 1, %s19
  %s22 = scalar_select 0, %s21, %s19
  $region1: #{forward.1} parent=0
    #allocation2 [shape = 'u8[32768]{0}', space=vmem, size = 0x8000, scoped, tag = 'input window, operand 6, single buffered']
    #allocation3 [shape = 's32[2]{0}', space=sflag, size = 0x8, scoped, tag = 'scoped memory for forward.1']
    #allocation4 [shape = 'u8[512]{0}', space=vmem, size = 0x400, scoped, tag = 'input window, operand 7, single buffered']
    #allocation5 [shape = 's32[1]{0}', space=sflag, size = 0x4, scoped, tag = 'scoped memory for forward.1']
    #allocation6 [shape = 'u8[8192]{0}', space=vmem, size = 0x2000, scoped, tag = 'input window, operand 8, single buffered']
    #allocation7 [shape = 'u8[512]{0}', space=vmem, size = 0x400, scoped, tag = 'input window, operand 9, single buffered']
    #allocation8 [shape = 's32[1]{0}', space=sflag, size = 0x4, scoped, tag = 'scoped memory for forward.1']
    #allocation9 [shape = 'u8[512]{0}', space=vmem, size = 0x400, scoped, tag = 'input window, operand 11, single buffered']
    #allocation10 [shape = 'u8[32768]{0}', space=vmem, size = 0x8000, scoped, tag = 'input window, operand 12, single buffered']
    #allocation11 [shape = 's32[1]{0}', space=sflag, size = 0x4, scoped, tag = 'scoped memory for forward.1']
    #allocation12 [shape = 'u8[512]{0}', space=vmem, size = 0x400, scoped, tag = 'input window, operand 13, single buffered']
    #allocation13 [shape = 'u8[32768]{0}', space=vmem, size = 0x8000, scoped, tag = 'input window, operand 14, single buffered']
    #allocation14 [shape = 's32[1]{0}', space=sflag, size = 0x4, scoped, tag = 'scoped memory for forward.1']
    #allocation15 [shape = 'u8[512]{0}', space=vmem, size = 0x400, scoped, tag = 'input window, operand 15, single buffered']
    %23 = vsyncpa [#allocation3], 0
    %24 = vsyncpa [#allocation5], 0
    %25 = vsyncpa [#allocation8], 0
    %26 = vsyncpa [#allocation11], 0
    %27 = vsyncpa [#allocation14], 0
    loop: start=0, step=1, limit=4
    $region2: #{forward.1} parent=1 // loop_pre_header
      _
    $region3: #{forward.1} parent=1 // loop_header
      %s29 = sphi 0, %s33
      %p30 = scmp.ge.s32.totalorder %s29, 4
      %s43 = sphi 0, %s45
      %s46 = sphi 0, %s43
      %s47 = sphi 0, %s46
      %s63 = sphi 0, %s47
      %s79 = sphi 0, %s81
      %s82 = sphi 0, %s79
      %s83 = sphi 0, %s82
      %s99 = sphi 0, %s83
      %s109 = sphi 0, %s111
      %s112 = sphi 0, %s109
      %s113 = sphi 0, %s112
      %s129 = sphi 0, %s113
      %s145 = sphi 0, %s147
      %s148 = sphi 0, %s145
      %s149 = sphi 0, %s148
      %s165 = sphi 0, %s149
      %s169 = sphi 0, %s169
      %s171 = sphi 0, %s169
      %s172 = sphi 0, %s171
      %s186 = sphi 0, %s172
      %s190 = sphi 0, %s190
      %s192 = sphi 0, %s190
      %s193 = sphi 0, %s192
      %s207 = sphi 0, %s193
      %s211 = sphi 0, %s211
      %s213 = sphi 0, %s211
      %s214 = sphi 0, %s213
      %s228 = sphi 0, %s214
      %s232 = sphi 0, %s232
      %s234 = sphi 0, %s232
      %s235 = sphi 0, %s234
      %s249 = sphi 0, %s235
      %s253 = sphi 0, %s253
      %s255 = sphi 0, %s253
      %s256 = sphi 0, %s255
      %s270 = sphi 0, %s256
      %s274 = sphi 0, %s274
      %s276 = sphi 0, %s274
      %s277 = sphi 0, %s276
      %s291 = sphi 0, %s277
      %s295 = sphi 0, %s295
      %s297 = sphi 0, %s295
      %s298 = sphi 0, %s297
      %s312 = sphi 0, %s298
      %s316 = sphi 0, %s316
      %s318 = sphi 0, %s316
      %s319 = sphi 0, %s318
      %s333 = sphi 0, %s319
      %s337 = sphi 0, %s337
      %s339 = sphi 0, %s337
      %s340 = sphi 0, %s339
      %s354 = sphi 0, %s340
      %s358 = sphi 0, %s358
      %s360 = sphi 0, %s358
      %s361 = sphi 0, %s360
      %s375 = sphi 0, %s361
      %s379 = sphi 0, %s379
      %s381 = sphi 0, %s379
      %s382 = sphi 0, %s381
      %s396 = sphi 0, %s382
      %s400 = sphi 0, %s400
      %s402 = sphi 0, %s400
      %s403 = sphi 0, %s402
      %s417 = sphi 0, %s403
      %s423 = sphi 0, %s425
      %s426 = sphi 0, %s423
      %s427 = sphi 0, %s426
      %s443 = sphi 0, %s427
      %s449 = sphi 0, %s451
      %s452 = sphi 0, %s449
      %s453 = sphi 0, %s452
      %s469 = sphi 0, %s453
    $region4: #{forward.1} parent=1 // loop_header_branch
      %32 = sbr.rel (%p30) target = $region8
    $region5: #{forward.1} parent=1 // loop_body
      %s34 = ssub.s32 %s29, 1
      %s35 = ssub.s32 %s29, 2
      %s36 = sadd.s32 %s29, 1
      %p37 = scmp.lt.s32.totalorder %s29, 0
      %s38 = scalar_select %p37, %s29, 0
      %p39 = scmp.lt.s32.totalorder %s36, 0
      %s40 = scalar_select %p39, %s36, 0
      %s41 = ssub.s32 %s38, %s40
      %p42 = scmp.eq.s32.totalorder %s41, 0
      %s44 = sadd.s32 %s43, 1
      %s45 = scalar_select %p42, %s43, %s44
      %p48 = pneg %p42
      %p49 = scmp.eq.s32.totalorder %s29, 1
      %p50 = por %p48, %p49
      %p51 = scmp.ne.s32.totalorder %s43, %s46
      %p52 = scmp.eq.s32.totalorder %s29, 0
      %p53 = por %p51, %p52
      %p54 = scmp.ne.s32.totalorder %s43, %s46
      %p55 = scmp.eq.s32.totalorder %s34, 1
      %p56 = por %p54, %p55
      %p57 = scmp.ne.s32.totalorder %s46, %s47
      %p58 = scmp.eq.s32.totalorder %s34, 0
      %p59 = por %p57, %p58
      %p60 = scmp.ne.s32.totalorder %s46, %s47
      %p61 = scmp.eq.s32.totalorder %s35, 1
      %p62 = por %p60, %p61
      %p64 = scmp.ne.s32.totalorder %s47, %s63
      %p65 = scmp.eq.s32.totalorder %s35, 0
      %p66 = por %p64, %p65
      %s67 = ssub.s32 %s29, 1
      %p68 = scmp.gt.s32.totalorder %s67, 0
      %s69 = scalar_select %p68, %s67, 0
      %p70 = scmp.lt.s32.totalorder %s69, 0
      %s71 = scalar_select %p70, %s69, 0
      %s72 = ssub.s32 %s36, 1
      %p73 = scmp.gt.s32.totalorder %s72, 0
      %s74 = scalar_select %p73, %s72, 0
      %p75 = scmp.lt.s32.totalorder %s74, 0
      %s76 = scalar_select %p75, %s74, 0
      %s77 = ssub.s32 %s71, %s76
      %p78 = scmp.eq.s32.totalorder %s77, 0
      %s80 = sadd.s32 %s79, 1
      %s81 = scalar_select %p78, %s79, %s80
      %p84 = pneg %p78
      %p85 = scmp.eq.s32.totalorder %s29, 1
      %p86 = por %p84, %p85
      %p87 = scmp.ne.s32.totalorder %s79, %s82
      %p88 = scmp.eq.s32.totalorder %s29, 0
      %p89 = por %p87, %p88
      %p90 = scmp.ne.s32.totalorder %s79, %s82
      %p91 = scmp.eq.s32.totalorder %s34, 1
      %p92 = por %p90, %p91
      %p93 = scmp.ne.s32.totalorder %s82, %s83
      %p94 = scmp.eq.s32.totalorder %s34, 0
      %p95 = por %p93, %p94
      %p96 = scmp.ne.s32.totalorder %s82, %s83
      %p97 = scmp.eq.s32.totalorder %s35, 1
      %p98 = por %p96, %p97
      %p100 = scmp.ne.s32.totalorder %s83, %s99
      %p101 = scmp.eq.s32.totalorder %s35, 0
      %p102 = por %p100, %p101
      %p103 = scmp.lt.s32.totalorder %s29, 0
      %s104 = scalar_select %p103, %s29, 0
      %p105 = scmp.lt.s32.totalorder %s36, 0
      %s106 = scalar_select %p105, %s36, 0
      %s107 = ssub.s32 %s104, %s106
      %p108 = scmp.eq.s32.totalorder %s107, 0
      %s110 = sadd.s32 %s109, 1
      %s111 = scalar_select %p108, %s109, %s110
      %p114 = pneg %p108
      %p115 = scmp.eq.s32.totalorder %s29, 1
      %p116 = por %p114, %p115
      %p117 = scmp.ne.s32.totalorder %s109, %s112
      %p118 = scmp.eq.s32.totalorder %s29, 0
      %p119 = por %p117, %p118
      %p120 = scmp.ne.s32.totalorder %s109, %s112
      %p121 = scmp.eq.s32.totalorder %s34, 1
      %p122 = por %p120, %p121
      %p123 = scmp.ne.s32.totalorder %s112, %s113
      %p124 = scmp.eq.s32.totalorder %s34, 0
      %p125 = por %p123, %p124
      %p126 = scmp.ne.s32.totalorder %s112, %s113
      %p127 = scmp.eq.s32.totalorder %s35, 1
      %p128 = por %p126, %p127
      %p130 = scmp.ne.s32.totalorder %s113, %s129
      %p131 = scmp.eq.s32.totalorder %s35, 0
      %p132 = por %p130, %p131
      %s133 = ssub.s32 %s29, 1
      %p134 = scmp.gt.s32.totalorder %s133, 0
      %s135 = scalar_select %p134, %s133, 0
      %p136 = scmp.lt.s32.totalorder %s135, 0
      %s137 = scalar_select %p136, %s135, 0
      %s138 = ssub.s32 %s36, 1
      %p139 = scmp.gt.s32.totalorder %s138, 0
      %s140 = scalar_select %p139, %s138, 0
      %p141 = scmp.lt.s32.totalorder %s140, 0
      %s142 = scalar_select %p141, %s140, 0
      %s143 = ssub.s32 %s137, %s142
      %p144 = scmp.eq.s32.totalorder %s143, 0
      %s146 = sadd.s32 %s145, 1
      %s147 = scalar_select %p144, %s145, %s146
      %p150 = pneg %p144
      %p151 = scmp.eq.s32.totalorder %s29, 1
      %p152 = por %p150, %p151
      %p153 = scmp.ne.s32.totalorder %s145, %s148
      %p154 = scmp.eq.s32.totalorder %s29, 0
      %p155 = por %p153, %p154
      %p156 = scmp.ne.s32.totalorder %s145, %s148
      %p157 = scmp.eq.s32.totalorder %s34, 1
      %p158 = por %p156, %p157
      %p159 = scmp.ne.s32.totalorder %s148, %s149
      %p160 = scmp.eq.s32.totalorder %s34, 0
      %p161 = por %p159, %p160
      %p162 = scmp.ne.s32.totalorder %s148, %s149
      %p163 = scmp.eq.s32.totalorder %s35, 1
      %p164 = por %p162, %p163
      %p166 = scmp.ne.s32.totalorder %s149, %s165
      %p167 = scmp.eq.s32.totalorder %s35, 0
      %p168 = por %p166, %p167
      %s170 = sadd.s32 %s169, 1
      %p173 = scmp.eq.s32.totalorder %s29, 1
      %p174 = scmp.ne.s32.totalorder %s169, %s171
      %p175 = scmp.eq.s32.totalorder %s29, 0
      %p176 = por %p174, %p175
      %p177 = scmp.ne.s32.totalorder %s169, %s171
      %p178 = scmp.eq.s32.totalorder %s34, 1
      %p179 = por %p177, %p178
      %p180 = scmp.ne.s32.totalorder %s171, %s172
      %p181 = scmp.eq.s32.totalorder %s34, 0
      %p182 = por %p180, %p181
      %p183 = scmp.ne.s32.totalorder %s171, %s172
      %p184 = scmp.eq.s32.totalorder %s35, 1
      %p185 = por %p183, %p184
      %p187 = scmp.ne.s32.totalorder %s172, %s186
      %p188 = scmp.eq.s32.totalorder %s35, 0
      %p189 = por %p187, %p188
      %s191 = sadd.s32 %s190, 1
      %p194 = scmp.eq.s32.totalorder %s29, 1
      %p195 = scmp.ne.s32.totalorder %s190, %s192
      %p196 = scmp.eq.s32.totalorder %s29, 0
      %p197 = por %p195, %p196
      %p198 = scmp.ne.s32.totalorder %s190, %s192
      %p199 = scmp.eq.s32.totalorder %s34, 1
      %p200 = por %p198, %p199
      %p201 = scmp.ne.s32.totalorder %s192, %s193
      %p202 = scmp.eq.s32.totalorder %s34, 0
      %p203 = por %p201, %p202
      %p204 = scmp.ne.s32.totalorder %s192, %s193
      %p205 = scmp.eq.s32.totalorder %s35, 1
      %p206 = por %p204, %p205
      %p208 = scmp.ne.s32.totalorder %s193, %s207
      %p209 = scmp.eq.s32.totalorder %s35, 0
      %p210 = por %p208, %p209
      %s212 = sadd.s32 %s211, 1
      %p215 = scmp.eq.s32.totalorder %s29, 1
      %p216 = scmp.ne.s32.totalorder %s211, %s213
      %p217 = scmp.eq.s32.totalorder %s29, 0
      %p218 = por %p216, %p217
      %p219 = scmp.ne.s32.totalorder %s211, %s213
      %p220 = scmp.eq.s32.totalorder %s34, 1
      %p221 = por %p219, %p220
      %p222 = scmp.ne.s32.totalorder %s213, %s214
      %p223 = scmp.eq.s32.totalorder %s34, 0
      %p224 = por %p222, %p223
      %p225 = scmp.ne.s32.totalorder %s213, %s214
      %p226 = scmp.eq.s32.totalorder %s35, 1
      %p227 = por %p225, %p226
      %p229 = scmp.ne.s32.totalorder %s214, %s228
      %p230 = scmp.eq.s32.totalorder %s35, 0
      %p231 = por %p229, %p230
      %s233 = sadd.s32 %s232, 1
      %p236 = scmp.eq.s32.totalorder %s29, 1
      %p237 = scmp.ne.s32.totalorder %s232, %s234
      %p238 = scmp.eq.s32.totalorder %s29, 0
      %p239 = por %p237, %p238
      %p240 = scmp.ne.s32.totalorder %s232, %s234
      %p241 = scmp.eq.s32.totalorder %s34, 1
      %p242 = por %p240, %p241
      %p243 = scmp.ne.s32.totalorder %s234, %s235
      %p244 = scmp.eq.s32.totalorder %s34, 0
      %p245 = por %p243, %p244
      %p246 = scmp.ne.s32.totalorder %s234, %s235
      %p247 = scmp.eq.s32.totalorder %s35, 1
      %p248 = por %p246, %p247
      %p250 = scmp.ne.s32.totalorder %s235, %s249
      %p251 = scmp.eq.s32.totalorder %s35, 0
      %p252 = por %p250, %p251
      %s254 = sadd.s32 %s253, 1
      %p257 = scmp.eq.s32.totalorder %s29, 1
      %p258 = scmp.ne.s32.totalorder %s253, %s255
      %p259 = scmp.eq.s32.totalorder %s29, 0
      %p260 = por %p258, %p259
      %p261 = scmp.ne.s32.totalorder %s253, %s255
      %p262 = scmp.eq.s32.totalorder %s34, 1
      %p263 = por %p261, %p262
      %p264 = scmp.ne.s32.totalorder %s255, %s256
      %p265 = scmp.eq.s32.totalorder %s34, 0
      %p266 = por %p264, %p265
      %p267 = scmp.ne.s32.totalorder %s255, %s256
      %p268 = scmp.eq.s32.totalorder %s35, 1
      %p269 = por %p267, %p268
      %p271 = scmp.ne.s32.totalorder %s256, %s270
      %p272 = scmp.eq.s32.totalorder %s35, 0
      %p273 = por %p271, %p272
      %s275 = sadd.s32 %s274, 1
      %p278 = scmp.eq.s32.totalorder %s29, 1
      %p279 = scmp.ne.s32.totalorder %s274, %s276
      %p280 = scmp.eq.s32.totalorder %s29, 0
      %p281 = por %p279, %p280
      %p282 = scmp.ne.s32.totalorder %s274, %s276
      %p283 = scmp.eq.s32.totalorder %s34, 1
      %p284 = por %p282, %p283
      %p285 = scmp.ne.s32.totalorder %s276, %s277
      %p286 = scmp.eq.s32.totalorder %s34, 0
      %p287 = por %p285, %p286
      %p288 = scmp.ne.s32.totalorder %s276, %s277
      %p289 = scmp.eq.s32.totalorder %s35, 1
      %p290 = por %p288, %p289
      %p292 = scmp.ne.s32.totalorder %s277, %s291
      %p293 = scmp.eq.s32.totalorder %s35, 0
      %p294 = por %p292, %p293
      %s296 = sadd.s32 %s295, 1
      %p299 = scmp.eq.s32.totalorder %s29, 1
      %p300 = scmp.ne.s32.totalorder %s295, %s297
      %p301 = scmp.eq.s32.totalorder %s29, 0
      %p302 = por %p300, %p301
      %p303 = scmp.ne.s32.totalorder %s295, %s297
      %p304 = scmp.eq.s32.totalorder %s34, 1
      %p305 = por %p303, %p304
      %p306 = scmp.ne.s32.totalorder %s297, %s298
      %p307 = scmp.eq.s32.totalorder %s34, 0
      %p308 = por %p306, %p307
      %p309 = scmp.ne.s32.totalorder %s297, %s298
      %p310 = scmp.eq.s32.totalorder %s35, 1
      %p311 = por %p309, %p310
      %p313 = scmp.ne.s32.totalorder %s298, %s312
      %p314 = scmp.eq.s32.totalorder %s35, 0
      %p315 = por %p313, %p314
      %s317 = sadd.s32 %s316, 1
      %p320 = scmp.eq.s32.totalorder %s29, 1
      %p321 = scmp.ne.s32.totalorder %s316, %s318
      %p322 = scmp.eq.s32.totalorder %s29, 0
      %p323 = por %p321, %p322
      %p324 = scmp.ne.s32.totalorder %s316, %s318
      %p325 = scmp.eq.s32.totalorder %s34, 1
      %p326 = por %p324, %p325
      %p327 = scmp.ne.s32.totalorder %s318, %s319
      %p328 = scmp.eq.s32.totalorder %s34, 0
      %p329 = por %p327, %p328
      %p330 = scmp.ne.s32.totalorder %s318, %s319
      %p331 = scmp.eq.s32.totalorder %s35, 1
      %p332 = por %p330, %p331
      %p334 = scmp.ne.s32.totalorder %s319, %s333
      %p335 = scmp.eq.s32.totalorder %s35, 0
      %p336 = por %p334, %p335
      %s338 = sadd.s32 %s337, 1
      %p341 = scmp.eq.s32.totalorder %s29, 1
      %p342 = scmp.ne.s32.totalorder %s337, %s339
      %p343 = scmp.eq.s32.totalorder %s29, 0
      %p344 = por %p342, %p343
      %p345 = scmp.ne.s32.totalorder %s337, %s339
      %p346 = scmp.eq.s32.totalorder %s34, 1
      %p347 = por %p345, %p346
      %p348 = scmp.ne.s32.totalorder %s339, %s340
      %p349 = scmp.eq.s32.totalorder %s34, 0
      %p350 = por %p348, %p349
      %p351 = scmp.ne.s32.totalorder %s339, %s340
      %p352 = scmp.eq.s32.totalorder %s35, 1
      %p353 = por %p351, %p352
      %p355 = scmp.ne.s32.totalorder %s340, %s354
      %p356 = scmp.eq.s32.totalorder %s35, 0
      %p357 = por %p355, %p356
      %s359 = sadd.s32 %s358, 1
      %p362 = scmp.eq.s32.totalorder %s29, 1
      %p363 = scmp.ne.s32.totalorder %s358, %s360
      %p364 = scmp.eq.s32.totalorder %s29, 0
      %p365 = por %p363, %p364
      %p366 = scmp.ne.s32.totalorder %s358, %s360
      %p367 = scmp.eq.s32.totalorder %s34, 1
      %p368 = por %p366, %p367
      %p369 = scmp.ne.s32.totalorder %s360, %s361
      %p370 = scmp.eq.s32.totalorder %s34, 0
      %p371 = por %p369, %p370
      %p372 = scmp.ne.s32.totalorder %s360, %s361
      %p373 = scmp.eq.s32.totalorder %s35, 1
      %p374 = por %p372, %p373
      %p376 = scmp.ne.s32.totalorder %s361, %s375
      %p377 = scmp.eq.s32.totalorder %s35, 0
      %p378 = por %p376, %p377
      %s380 = sadd.s32 %s379, 1
      %p383 = scmp.eq.s32.totalorder %s29, 1
      %p384 = scmp.ne.s32.totalorder %s379, %s381
      %p385 = scmp.eq.s32.totalorder %s29, 0
      %p386 = por %p384, %p385
      %p387 = scmp.ne.s32.totalorder %s379, %s381
      %p388 = scmp.eq.s32.totalorder %s34, 1
      %p389 = por %p387, %p388
      %p390 = scmp.ne.s32.totalorder %s381, %s382
      %p391 = scmp.eq.s32.totalorder %s34, 0
      %p392 = por %p390, %p391
      %p393 = scmp.ne.s32.totalorder %s381, %s382
      %p394 = scmp.eq.s32.totalorder %s35, 1
      %p395 = por %p393, %p394
      %p397 = scmp.ne.s32.totalorder %s382, %s396
      %p398 = scmp.eq.s32.totalorder %s35, 0
      %p399 = por %p397, %p398
      %s401 = sadd.s32 %s400, 1
      %p404 = scmp.eq.s32.totalorder %s29, 1
      %p405 = scmp.ne.s32.totalorder %s400, %s402
      %p406 = scmp.eq.s32.totalorder %s29, 0
      %p407 = por %p405, %p406
      %p408 = scmp.ne.s32.totalorder %s400, %s402
      %p409 = scmp.eq.s32.totalorder %s34, 1
      %p410 = por %p408, %p409
      %p411 = scmp.ne.s32.totalorder %s402, %s403
      %p412 = scmp.eq.s32.totalorder %s34, 0
      %p413 = por %p411, %p412
      %p414 = scmp.ne.s32.totalorder %s402, %s403
      %p415 = scmp.eq.s32.totalorder %s35, 1
      %p416 = por %p414, %p415
      %p418 = scmp.ne.s32.totalorder %s403, %s417
      %p419 = scmp.eq.s32.totalorder %s35, 0
      %p420 = por %p418, %p419
      %s421 = ssub.s32 %s29, %s36
      %p422 = scmp.eq.s32.totalorder %s421, 0
      %s424 = sadd.s32 %s423, 1
      %s425 = scalar_select %p422, %s423, %s424
      %p428 = pneg %p422
      %p429 = scmp.eq.s32.totalorder %s29, 1
      %p430 = por %p428, %p429
      %p431 = scmp.ne.s32.totalorder %s423, %s426
      %p432 = scmp.eq.s32.totalorder %s29, 0
      %p433 = por %p431, %p432
      %p434 = scmp.ne.s32.totalorder %s423, %s426
      %p435 = scmp.eq.s32.totalorder %s34, 1
      %p436 = por %p434, %p435
      %p437 = scmp.ne.s32.totalorder %s426, %s427
      %p438 = scmp.eq.s32.totalorder %s34, 0
      %p439 = por %p437, %p438
      %p440 = scmp.ne.s32.totalorder %s426, %s427
      %p441 = scmp.eq.s32.totalorder %s35, 1
      %p442 = por %p440, %p441
      %p444 = scmp.ne.s32.totalorder %s427, %s443
      %p445 = scmp.eq.s32.totalorder %s35, 0
      %p446 = por %p444, %p445
      %s447 = ssub.s32 %s29, %s36
      %p448 = scmp.eq.s32.totalorder %s447, 0
      %s450 = sadd.s32 %s449, 1
      %s451 = scalar_select %p448, %s449, %s450
      %p454 = pneg %p448
      %p455 = scmp.eq.s32.totalorder %s29, 1
      %p456 = por %p454, %p455
      %p457 = scmp.ne.s32.totalorder %s449, %s452
      %p458 = scmp.eq.s32.totalorder %s29, 0
      %p459 = por %p457, %p458
      %p460 = scmp.ne.s32.totalorder %s449, %s452
      %p461 = scmp.eq.s32.totalorder %s34, 1
      %p462 = por %p460, %p461
      %p463 = scmp.ne.s32.totalorder %s452, %s453
      %p464 = scmp.eq.s32.totalorder %s34, 0
      %p465 = por %p463, %p464
      %p466 = scmp.ne.s32.totalorder %s452, %s453
      %p467 = scmp.eq.s32.totalorder %s35, 1
      %p468 = por %p466, %p467
      %p470 = scmp.ne.s32.totalorder %s453, %s469
      %p471 = scmp.eq.s32.totalorder %s35, 0
      %p472 = por %p470, %p471
      %p473 = scmp.le.s32.totalorder 1, %s29
      %p474 = scmp.lt.s32.totalorder %s29, 3
      %p475 = pnand %p473, %p474
      %p476 = pneg %p475
      // Predicated region
      $region9: #{forward.1} parent=5 // pred_check
        _
      $region10: #{forward.1} parent=5 // pred_check_branch
        %478 = sbr.rel (%p475) target = $region12
      $region11: #{forward.1} parent=5 // pred_region
        %s479 = ssub.s32 %s29, 1
        // Predicated region
        $region13: #{forward.1} parent=11 // pred_check
          %p480 = pneg %p182
        $region14: #{forward.1} parent=11 // pred_check_branch
          %482 = sbr.rel (%p480) target = $region16
        $region15: #{forward.1} parent=11 // pred_region
          _
        $region16: #{forward.1} parent=11 // pred_fallthru
          _
        // Predicated region
        $region17: #{forward.1} parent=11 // pred_check
          %p483 = pneg %p203
        $region18: #{forward.1} parent=11 // pred_check_branch
          %485 = sbr.rel (%p483) target = $region20
        $region19: #{forward.1} parent=11 // pred_region
          _
        $region20: #{forward.1} parent=11 // pred_fallthru
          _
        // Predicated region
        $region21: #{forward.1} parent=11 // pred_check
          %p486 = pneg %p224
        $region22: #{forward.1} parent=11 // pred_check_branch
          %488 = sbr.rel (%p486) target = $region24
        $region23: #{forward.1} parent=11 // pred_region
          %s490 = ssub.s32 1024, 1024
          %491 = vsyncadd [#allocation3], %s490
          %s492 = sshll.u32 [#allocation2], 4
          %s493 = int_to_ptr.vmem [resolvable:$true] %s492
          %498 = dma.hbm_to_vmem [thread:$0]  %s6, 1024, %s493, [#allocation3], 64, 64, 4
        $region24: #{forward.1} parent=11 // pred_fallthru
          _
        // Predicated region
        $region25: #{forward.1} parent=11 // pred_check
          %p499 = pneg %p245
        $region26: #{forward.1} parent=11 // pred_check_branch
          %501 = sbr.rel (%p499) target = $region28
        $region27: #{forward.1} parent=11 // pred_region
          %s503 = ssub.s32 16, 16
          %504 = vsyncadd [#allocation5], %s503
          %s506 = sshll.u32 [#allocation4], 4
          %s507 = int_to_ptr.vmem [resolvable:$true] %s506
          %509 = dma.hbm_to_vmem [thread:$0]  %s7, 16, %s507, [#allocation5]
        $region28: #{forward.1} parent=11 // pred_fallthru
          _
        // Predicated region
        $region29: #{forward.1} parent=11 // pred_check
          %p510 = pneg %p266
        $region30: #{forward.1} parent=11 // pred_check_branch
          %512 = sbr.rel (%p510) target = $region32
        $region31: #{forward.1} parent=11 // pred_region
          %s514 = ssub.s32 256, 256
          %515 = vsyncadd [#allocation5], %s514
          %s516 = sshll.u32 [#allocation6], 4
          %s517 = int_to_ptr.vmem [resolvable:$true] %s516
          %522 = dma.hbm_to_vmem [thread:$0]  %s8, 256, %s517, [#allocation5], 64, 64, 4
        $region32: #{forward.1} parent=11 // pred_fallthru
          _
        // Predicated region
        $region33: #{forward.1} parent=11 // pred_check
          %p523 = pneg %p287
        $region34: #{forward.1} parent=11 // pred_check_branch
          %525 = sbr.rel (%p523) target = $region36
        $region35: #{forward.1} parent=11 // pred_region
          %s527 = ssub.s32 16, 16
          %528 = vsyncadd [#allocation8], %s527
          %s530 = sshll.u32 [#allocation7], 4
          %s531 = int_to_ptr.vmem [resolvable:$true] %s530
          %533 = dma.hbm_to_vmem [thread:$0]  %s9, 16, %s531, [#allocation8]
        $region36: #{forward.1} parent=11 // pred_fallthru
          _
        // Predicated region
        $region37: #{forward.1} parent=11 // pred_check
          %p534 = pneg %p308
        $region38: #{forward.1} parent=11 // pred_check_branch
          %536 = sbr.rel (%p534) target = $region40
        $region39: #{forward.1} parent=11 // pred_region
          _
        $region40: #{forward.1} parent=11 // pred_fallthru
          _
        // Predicated region
        $region41: #{forward.1} parent=11 // pred_check
          %p537 = pneg %p329
        $region42: #{forward.1} parent=11 // pred_check_branch
          %539 = sbr.rel (%p537) target = $region44
        $region43: #{forward.1} parent=11 // pred_region
          %s541 = ssub.s32 16, 16
          %542 = vsyncadd [#allocation8], %s541
          %s544 = sshll.u32 [#allocation9], 4
          %s545 = int_to_ptr.vmem [resolvable:$true] %s544
          %547 = dma.hbm_to_vmem [thread:$0]  %s11, 16, %s545, [#allocation8]
        $region44: #{forward.1} parent=11 // pred_fallthru
          _
        // Predicated region
        $region45: #{forward.1} parent=11 // pred_check
          %p548 = pneg %p350
        $region46: #{forward.1} parent=11 // pred_check_branch
          %550 = sbr.rel (%p548) target = $region48
        $region47: #{forward.1} parent=11 // pred_region
          %s552 = ssub.s32 1024, 1024
          %553 = vsyncadd [#allocation11], %s552
          %s554 = sshll.u32 [#allocation10], 4
          %s555 = int_to_ptr.vmem [resolvable:$true] %s554
          %560 = dma.hbm_to_vmem [thread:$0]  %s12, 1024, %s555, [#allocation11], 64, 64, 4
        $region48: #{forward.1} parent=11 // pred_fallthru
          _
        // Predicated region
        $region49: #{forward.1} parent=11 // pred_check
          %p561 = pneg %p371
        $region50: #{forward.1} parent=11 // pred_check_branch
          %563 = sbr.rel (%p561) target = $region52
        $region51: #{forward.1} parent=11 // pred_region
          %s565 = ssub.s32 16, 16
          %566 = vsyncadd [#allocation11], %s565
          %s568 = sshll.u32 [#allocation12], 4
          %s569 = int_to_ptr.vmem [resolvable:$true] %s568
          %571 = dma.hbm_to_vmem [thread:$0]  %s13, 16, %s569, [#allocation11]
        $region52: #{forward.1} parent=11 // pred_fallthru
          _
        // Predicated region
        $region53: #{forward.1} parent=11 // pred_check
          %p572 = pneg %p392
        $region54: #{forward.1} parent=11 // pred_check_branch
          %574 = sbr.rel (%p572) target = $region56
        $region55: #{forward.1} parent=11 // pred_region
          %s576 = ssub.s32 1024, 1024
          %577 = vsyncadd [#allocation14], %s576
          %s578 = sshll.u32 [#allocation13], 4
          %s579 = int_to_ptr.vmem [resolvable:$true] %s578
          %584 = dma.hbm_to_vmem [thread:$0]  %s14, 1024, %s579, [#allocation14], 64, 64, 4
        $region56: #{forward.1} parent=11 // pred_fallthru
          _
        // Predicated region
        $region57: #{forward.1} parent=11 // pred_check
          %p585 = pneg %p413
        $region58: #{forward.1} parent=11 // pred_check_branch
          %587 = sbr.rel (%p585) target = $region60
        $region59: #{forward.1} parent=11 // pred_region
          %s589 = ssub.s32 16, 16
          %590 = vsyncadd [#allocation14], %s589
          %s592 = sshll.u32 [#allocation15], 4
          %s593 = int_to_ptr.vmem [resolvable:$true] %s592
          %595 = dma.hbm_to_vmem [thread:$0]  %s15, 16, %s593, [#allocation14]
        $region60: #{forward.1} parent=11 // pred_fallthru
          _
      $region12: #{forward.1} parent=5 // pred_fallthru
        _
      %p596 = scmp.lt.s32.totalorder %s29, 2
      // Predicated region
      $region61: #{forward.1} parent=5 // pred_check
        %p597 = pneg %p596
      $region62: #{forward.1} parent=5 // pred_check_branch
        %599 = sbr.rel (%p597) target = $region64
      $region63: #{forward.1} parent=5 // pred_region
        // Predicated region
        $region65: #{forward.1} parent=63 // pred_check
          %p600 = pneg %p53
        $region66: #{forward.1} parent=63 // pred_check_branch
          %602 = sbr.rel (%p600) target = $region68
        $region67: #{forward.1} parent=63 // pred_region
          %p603 = scmp.lt.s32.totalorder %s29, 0
          %s604 = scalar_select %p603, %s29, 0
          %p605 = scmp.lt.s32.totalorder %s604, 0
          %s606 = scalar_select %p605, %s604, 0
          %s607 = smul.addr %s606, 8
          %s608 = scalar_lea.vmem %s0, %s607
          %p609 = scmp.lt.s32.totalorder %s29, 0
          %s610 = scalar_select %p609, %s29, 0
        $region68: #{forward.1} parent=63 // pred_fallthru
          _
        // Predicated region
        $region69: #{forward.1} parent=63 // pred_check
          %p611 = pneg %p89
        $region70: #{forward.1} parent=63 // pred_check_branch
          %613 = sbr.rel (%p611) target = $region72
        $region71: #{forward.1} parent=63 // pred_region
          %s614 = ssub.s32 %s29, 1
          %p615 = scmp.gt.s32.totalorder %s614, 0
          %s616 = scalar_select %p615, %s614, 0
          %p617 = scmp.lt.s32.totalorder %s616, 0
          %s618 = scalar_select %p617, %s616, 0
          %p619 = scmp.lt.s32.totalorder %s618, 0
          %s620 = scalar_select %p619, %s618, 0
          %s621 = smul.addr %s620, 8
          %s622 = scalar_lea.vmem %s1, %s621
          %s623 = ssub.s32 %s29, 1
          %p624 = scmp.gt.s32.totalorder %s623, 0
          %s625 = scalar_select %p624, %s623, 0
          %p626 = scmp.lt.s32.totalorder %s625, 0
          %s627 = scalar_select %p626, %s625, 0
        $region72: #{forward.1} parent=63 // pred_fallthru
          _
        // Predicated region
        $region73: #{forward.1} parent=63 // pred_check
          %p628 = pneg %p119
        $region74: #{forward.1} parent=63 // pred_check_branch
          %630 = sbr.rel (%p628) target = $region76
        $region75: #{forward.1} parent=63 // pred_region
          %p631 = scmp.lt.s32.totalorder %s29, 0
          %s632 = scalar_select %p631, %s29, 0
          %p633 = scmp.lt.s32.totalorder %s632, 0
          %s634 = scalar_select %p633, %s632, 0
          %s635 = smul.addr %s634, 8
          %s636 = scalar_lea.vmem %s2, %s635
          %p637 = scmp.lt.s32.totalorder %s29, 0
          %s638 = scalar_select %p637, %s29, 0
        $region76: #{forward.1} parent=63 // pred_fallthru
          _
        // Predicated region
        $region77: #{forward.1} parent=63 // pred_check
          %p639 = pneg %p155
        $region78: #{forward.1} parent=63 // pred_check_branch
          %641 = sbr.rel (%p639) target = $region80
        $region79: #{forward.1} parent=63 // pred_region
          %s642 = ssub.s32 %s29, 1
          %p643 = scmp.gt.s32.totalorder %s642, 0
          %s644 = scalar_select %p643, %s642, 0
          %p645 = scmp.lt.s32.totalorder %s644, 0
          %s646 = scalar_select %p645, %s644, 0
          %p647 = scmp.lt.s32.totalorder %s646, 0
          %s648 = scalar_select %p647, %s646, 0
          %s649 = smul.addr %s648, 8
          %s650 = scalar_lea.vmem %s3, %s649
          %s651 = ssub.s32 %s29, 1
          %p652 = scmp.gt.s32.totalorder %s651, 0
          %s653 = scalar_select %p652, %s651, 0
          %p654 = scmp.lt.s32.totalorder %s653, 0
          %s655 = scalar_select %p654, %s653, 0
        $region80: #{forward.1} parent=63 // pred_fallthru
          _
      $region64: #{forward.1} parent=5 // pred_fallthru
        _
      %p656 = scmp.le.s32.totalorder 1, %s29
      %p657 = scmp.lt.s32.totalorder %s29, 3
      %p658 = pnand %p656, %p657
      %p659 = pneg %p658
      // Predicated region
      $region81: #{forward.1} parent=5 // pred_check
        _
      $region82: #{forward.1} parent=5 // pred_check_branch
        %661 = sbr.rel (%p658) target = $region84
      $region83: #{forward.1} parent=5 // pred_region
        %s662 = ssub.s32 %s29, 1
        // Predicated region
        $region85: #{forward.1} parent=83 // pred_check
          %p663 = pneg %p224
        $region86: #{forward.1} parent=83 // pred_check_branch
          %665 = sbr.rel (%p663) target = $region88
        $region87: #{forward.1} parent=83 // pred_region
          %666 = dma.done [#allocation3], 1024
        $region88: #{forward.1} parent=83 // pred_fallthru
          _
        // Predicated region
        $region89: #{forward.1} parent=83 // pred_check
          %p667 = pneg %p245
        $region90: #{forward.1} parent=83 // pred_check_branch
          %669 = sbr.rel (%p667) target = $region92
        $region91: #{forward.1} parent=83 // pred_region
          %670 = dma.done [#allocation5], 16
        $region92: #{forward.1} parent=83 // pred_fallthru
          _
        // Predicated region
        $region93: #{forward.1} parent=83 // pred_check
          %p671 = pneg %p266
        $region94: #{forward.1} parent=83 // pred_check_branch
          %673 = sbr.rel (%p671) target = $region96
        $region95: #{forward.1} parent=83 // pred_region
          %674 = dma.done [#allocation5], 256
        $region96: #{forward.1} parent=83 // pred_fallthru
          _
        // Predicated region
        $region97: #{forward.1} parent=83 // pred_check
          %p675 = pneg %p287
        $region98: #{forward.1} parent=83 // pred_check_branch
          %677 = sbr.rel (%p675) target = $region100
        $region99: #{forward.1} parent=83 // pred_region
          %678 = dma.done [#allocation8], 16
        $region100: #{forward.1} parent=83 // pred_fallthru
          _
        // Predicated region
        $region101: #{forward.1} parent=83 // pred_check
          %p679 = pneg %p329
        $region102: #{forward.1} parent=83 // pred_check_branch
          %681 = sbr.rel (%p679) target = $region104
        $region103: #{forward.1} parent=83 // pred_region
          %682 = dma.done [#allocation8], 16
        $region104: #{forward.1} parent=83 // pred_fallthru
          _
        // Predicated region
        $region105: #{forward.1} parent=83 // pred_check
          %p683 = pneg %p350
        $region106: #{forward.1} parent=83 // pred_check_branch
          %685 = sbr.rel (%p683) target = $region108
        $region107: #{forward.1} parent=83 // pred_region
          %686 = dma.done [#allocation11], 1024
        $region108: #{forward.1} parent=83 // pred_fallthru
          _
        // Predicated region
        $region109: #{forward.1} parent=83 // pred_check
          %p687 = pneg %p371
        $region110: #{forward.1} parent=83 // pred_check_branch
          %689 = sbr.rel (%p687) target = $region112
        $region111: #{forward.1} parent=83 // pred_region
          %690 = dma.done [#allocation11], 16
        $region112: #{forward.1} parent=83 // pred_fallthru
          _
        // Predicated region
        $region113: #{forward.1} parent=83 // pred_check
          %p691 = pneg %p392
        $region114: #{forward.1} parent=83 // pred_check_branch
          %693 = sbr.rel (%p691) target = $region116
        $region115: #{forward.1} parent=83 // pred_region
          %694 = dma.done [#allocation14], 1024
        $region116: #{forward.1} parent=83 // pred_fallthru
          _
        // Predicated region
        $region117: #{forward.1} parent=83 // pred_check
          %p695 = pneg %p413
        $region118: #{forward.1} parent=83 // pred_check_branch
          %697 = sbr.rel (%p695) target = $region120
        $region119: #{forward.1} parent=83 // pred_region
          %698 = dma.done [#allocation14], 16
        $region120: #{forward.1} parent=83 // pred_fallthru
          _
        %p699 = scmp.lt.s32.totalorder %s34, 0
        %s700 = scalar_select %p699, %s34, 0
        %p701 = scmp.lt.s32.totalorder %s700, 0
        %s702 = scalar_select %p701, %s700, 0
        %s703 = smul.addr %s702, 8
        %s704 = scalar_lea.vmem %s0, %s703
        %p705 = pneg %p59
        %p706 = pneg %p56
        %s707 = ssub.s32 %s34, 1
        %p708 = scmp.gt.s32.totalorder %s707, 0
        %s709 = scalar_select %p708, %s707, 0
        %p710 = scmp.lt.s32.totalorder %s709, 0
        %s711 = scalar_select %p710, %s709, 0
        %p712 = scmp.lt.s32.totalorder %s711, 0
        %s713 = scalar_select %p712, %s711, 0
        %s714 = smul.addr %s713, 8
        %s715 = scalar_lea.vmem %s1, %s714
        %p716 = pneg %p95
        %p717 = pneg %p92
        %p718 = scmp.lt.s32.totalorder %s34, 0
        %s719 = scalar_select %p718, %s34, 0
        %p720 = scmp.lt.s32.totalorder %s719, 0
        %s721 = scalar_select %p720, %s719, 0
        %s722 = smul.addr %s721, 8
        %s723 = scalar_lea.vmem %s2, %s722
        %p724 = pneg %p125
        %p725 = pneg %p122
        %s726 = ssub.s32 %s34, 1
        %p727 = scmp.gt.s32.totalorder %s726, 0
        %s728 = scalar_select %p727, %s726, 0
        %p729 = scmp.lt.s32.totalorder %s728, 0
        %s730 = scalar_select %p729, %s728, 0
        %p731 = scmp.lt.s32.totalorder %s730, 0
        %s732 = scalar_select %p731, %s730, 0
        %s733 = smul.addr %s732, 8
        %s734 = scalar_lea.vmem %s3, %s733
        %p735 = pneg %p161
        %p736 = pneg %p158
        %p737 = pneg %p182
        %p738 = pneg %p179
        %p739 = pneg %p203
        %p740 = pneg %p200
        %p741 = pneg %p224
        %p742 = pneg %p221
        %p743 = pneg %p245
        %p744 = pneg %p242
        %p745 = pneg %p266
        %p746 = pneg %p263
        %p747 = pneg %p287
        %p748 = pneg %p284
        %p749 = pneg %p308
        %p750 = pneg %p305
        %p751 = pneg %p329
        %p752 = pneg %p326
        %p753 = pneg %p350
        %p754 = pneg %p347
        %p755 = pneg %p371
        %p756 = pneg %p368
        %p757 = pneg %p392
        %p758 = pneg %p389
        %p759 = pneg %p413
        %p760 = pneg %p410
        %p761 = pneg %p439
        %p762 = pneg %p436
        %p763 = scmp.lt.s32.totalorder %s34, 1
        %s764 = scalar_select %p763, %s34, 1
        %s765 = smul.addr %s764, 8
        %s766 = scalar_lea.vmem %s16, %s765
        %p767 = pneg %p465
        %p768 = pneg %p462
        %p769 = scmp.lt.s32.totalorder %s34, 1
        %s770 = scalar_select %p769, %s34, 1
        %s771 = smul.addr %s770, 8
        %s772 = scalar_lea.vmem %s17, %s771
        %p773 = scmp.lt.s32.totalorder %s34, 0
        %s774 = scalar_select %p773, %s34, 0
        %p775 = scmp.lt.s32.totalorder %s774, 0
        %s776 = scalar_select %p775, %s774, 0
        %s777 = smul.addr %s776, 8
        %s778 = scalar_lea.vmem %s0, %s777
        %p779 = scmp.lt.s32.totalorder %s34, 0
        %s780 = scalar_select %p779, %s34, 0
        %s781 = ssub.s32 %s34, 1
        %p782 = scmp.gt.s32.totalorder %s781, 0
        %s783 = scalar_select %p782, %s781, 0
        %p784 = scmp.lt.s32.totalorder %s783, 0
        %s785 = scalar_select %p784, %s783, 0
        %p786 = scmp.lt.s32.totalorder %s785, 0
        %s787 = scalar_select %p786, %s785, 0
        %s788 = smul.addr %s787, 8
        %s789 = scalar_lea.vmem %s1, %s788
        %s790 = ssub.s32 %s34, 1
        %p791 = scmp.gt.s32.totalorder %s790, 0
        %s792 = scalar_select %p791, %s790, 0
        %p793 = scmp.lt.s32.totalorder %s792, 0
        %s794 = scalar_select %p793, %s792, 0
        %p795 = scmp.lt.s32.totalorder %s34, 0
        %s796 = scalar_select %p795, %s34, 0
        %p797 = scmp.lt.s32.totalorder %s796, 0
        %s798 = scalar_select %p797, %s796, 0
        %s799 = smul.addr %s798, 8
        %s800 = scalar_lea.vmem %s2, %s799
        %p801 = scmp.lt.s32.totalorder %s34, 0
        %s802 = scalar_select %p801, %s34, 0
        %s803 = ssub.s32 %s34, 1
        %p804 = scmp.gt.s32.totalorder %s803, 0
        %s805 = scalar_select %p804, %s803, 0
        %p806 = scmp.lt.s32.totalorder %s805, 0
        %s807 = scalar_select %p806, %s805, 0
        %p808 = scmp.lt.s32.totalorder %s807, 0
        %s809 = scalar_select %p808, %s807, 0
        %s810 = smul.addr %s809, 8
        %s811 = scalar_lea.vmem %s3, %s810
        %s812 = ssub.s32 %s34, 1
        %p813 = scmp.gt.s32.totalorder %s812, 0
        %s814 = scalar_select %p813, %s812, 0
        %p815 = scmp.lt.s32.totalorder %s814, 0
        %s816 = scalar_select %p815, %s814, 0
        %p817 = scmp.lt.s32.totalorder %s34, 1
        %s818 = scalar_select %p817, %s34, 1
        %s819 = smul.addr %s818, 8
        %s820 = scalar_lea.vmem %s16, %s819
        %p821 = scmp.lt.s32.totalorder %s34, 1
        %s822 = scalar_select %p821, %s34, 1
        %s823 = smul.addr %s822, 8
        %s824 = scalar_lea.vmem %s17, %s823
        %p826 = scmp.lt.s32.totalorder %s34, 1
        %v827 = vld [vmem:[%s778] sm:$0xff]
        %v828 = vld [vmem:[%s789] sm:$0xff]
        %s829 = scalar_select %p826, 1, 0
        %v830 = vstv %s829
        %vm831 = vcmp.eq.s32.totalorder %v830, 1
        %v832 = vsel %vm831, %v827, %v828
        %v833 = vld [vmem:[%s800] sm:$0xff]
        %v834 = vld [vmem:[%s811] sm:$0xff]
        %v835 = vsel %vm831, %v833, %v834
        %v836 = vld [vmem:[%s4] sm:$0xf]
        %v837 = vld [vmem:[%s4 + $0x4] sm:$0xf]
        %v838 = vld [vmem:[%s4 + $0x8] sm:$0xf]
        %v839 = vld [vmem:[%s4 + $0xc] sm:$0xf]
        %v840 = vld [vmem:[%s5] sm:$0x1]
        %v841 = vpack.c.bf16 %v832, %v832
        %v843 = vlaneseq
        %v844 = vshrl.u32 %v843, 7
        %v845 = vsub.s32 0, %v844
        %v846 = vrot.slane %v840, %v845
        %v852 = vunpack.c.l.b16 %v836
        %v853 = vunpack.c.l.b16 %v837
        %v854 = vunpack.c.l.b16 %v838
        %v855 = vunpack.c.l.b16 %v839
        %v856 = vpack.c.b16 %v853, %v852
        %v857 = vpack.c.b16 %v855, %v854
        %vm860 = vcmask 261120
        %v862 = vsel %vm860, %v841, 0
        %864 = vmatprep.subr.bf16.mxu0 0
        %865 = vmatpush1.bf16.msra.mxu0 %v856
        %866 = vmatprep.subr.bf16.mxu0 0
        %867 = vmatpush1.bf16.msra.mxu0 %v857
        %868 = vmatprep.subr.bf16.mxu0 0
        %869 = vmatpush1.bf16.msra.mxu0 0
        %870 = vmatprep.subr.bf16.mxu0 0
        %871 = vmatpush1.bf16.msra.mxu0 0
        %872 = vmatprep.subr.bf16.mxu0 0
        %873 = vmatpush1.bf16.msra.mxu0 0
        %874 = vmatprep.subr.bf16.mxu0 0
        %875 = vmatpush1.bf16.msra.mxu0 0
        %876 = vmatprep.subr.bf16.mxu0 0
        %877 = vmatpush1.bf16.msra.mxu0 0
        %878 = vmatprep.subr.bf16.mxu0 0
        %879 = vmatpush1.bf16.msra.mxu0 0
        %880 = vmatprep.subr.bf16.mxu0 0
        %881 = vmatpush1.bf16.msra.mxu0 0
        %882 = vmatprep.subr.bf16.mxu0 0
        %883 = vmatpush1.bf16.msra.mxu0 0
        %884 = vmatprep.subr.bf16.mxu0 0
        %885 = vmatpush1.bf16.msra.mxu0 0
        %886 = vmatprep.subr.bf16.mxu0 0
        %887 = vmatpush1.bf16.msra.mxu0 0
        %888 = vmatprep.subr.bf16.mxu0 0
        %889 = vmatpush1.bf16.msra.mxu0 0
        %890 = vmatprep.subr.bf16.mxu0 0
        %891 = vmatpush1.bf16.msra.mxu0 0
        %892 = vmatprep.subr.bf16.mxu0 0
        %893 = vmatpush1.bf16.msra.mxu0 0
        %894 = vmatprep.subr.bf16.mxu0 0
        %895 = vmatpush1.bf16.msra.mxu0 0
        %896 = vmatprep.mubr.bf16.mxu0 0
        %897 = vmatmul.mubr.bf16.gmra.mrb[0].mxu0 %v862
        %v898 = vpop.f32.mrb[0].mxu0
        %v899 = vadd.f32 %v846, %v898
        %v900 = vpop.f32.mrb[0].mxu0
        %v901 = vpop.f32.mrb[0].mxu0
        %v902 = vpop.f32.mrb[0].mxu0
        %903 = vdwg.mxu0
        %v904 = vmax.f32 %v899, 0.0
        %v905 = vld [vmem:[#allocation2] sm:$0xf]
        %v906 = vld [vmem:[#allocation2 + $0x4] sm:$0xf]
        %v907 = vld [vmem:[#allocation2 + $0x8] sm:$0xf]
        %v908 = vld [vmem:[#allocation2 + $0xc] sm:$0xf]
        %v909 = vld [vmem:[#allocation2 + $0x10] sm:$0xf]
        %v910 = vld [vmem:[#allocation2 + $0x14] sm:$0xf]
        %v911 = vld [vmem:[#allocation2 + $0x18] sm:$0xf]
        %v912 = vld [vmem:[#allocation2 + $0x1c] sm:$0xf]
        %v913 = vld [vmem:[#allocation2 + $0x20] sm:$0xf]
        %v914 = vld [vmem:[#allocation2 + $0x24] sm:$0xf]
        %v915 = vld [vmem:[#allocation2 + $0x28] sm:$0xf]
        %v916 = vld [vmem:[#allocation2 + $0x2c] sm:$0xf]
        %v917 = vld [vmem:[#allocation2 + $0x30] sm:$0xf]
        %v918 = vld [vmem:[#allocation2 + $0x34] sm:$0xf]
        %v919 = vld [vmem:[#allocation2 + $0x38] sm:$0xf]
        %v920 = vld [vmem:[#allocation2 + $0x3c] sm:$0xf]
        %v921 = vld [vmem:[#allocation4] sm:$0x1]
        %v922 = vpack.c.bf16 %v904, %v904
        %v924 = vlaneseq
        %v925 = vshrl.u32 %v924, 7
        %v926 = vsub.s32 0, %v925
        %v927 = vrot.slane %v921, %v926
        %v945 = vunpack.c.l.b16 %v905
        %v946 = vunpack.c.l.b16 %v906
        %v947 = vunpack.c.l.b16 %v907
        %v948 = vunpack.c.l.b16 %v908
        %v949 = vunpack.c.l.b16 %v909
        %v950 = vunpack.c.l.b16 %v910
        %v951 = vunpack.c.l.b16 %v911
        %v952 = vunpack.c.l.b16 %v912
        %v953 = vunpack.c.l.b16 %v913
        %v954 = vunpack.c.l.b16 %v914
        %v955 = vunpack.c.l.b16 %v915
        %v956 = vunpack.c.l.b16 %v916
        %v957 = vunpack.c.l.b16 %v917
        %v958 = vunpack.c.l.b16 %v918
        %v959 = vunpack.c.l.b16 %v919
        %v960 = vunpack.c.l.b16 %v920
        %v961 = vpack.c.b16 %v946, %v945
        %v962 = vpack.c.b16 %v948, %v947
        %v963 = vpack.c.b16 %v950, %v949
        %v964 = vpack.c.b16 %v952, %v951
        %v965 = vpack.c.b16 %v954, %v953
        %v966 = vpack.c.b16 %v956, %v955
        %v967 = vpack.c.b16 %v958, %v957
        %v968 = vpack.c.b16 %v960, %v959
        %977 = vmatprep.subr.bf16.mxu0 0
        %978 = vmatpush1.bf16.msra.mxu0 %v961
        %979 = vmatprep.subr.bf16.mxu0 0
        %980 = vmatpush1.bf16.msra.mxu0 %v962
        %981 = vmatprep.subr.bf16.mxu0 0
        %982 = vmatpush1.bf16.msra.mxu0 %v963
        %983 = vmatprep.subr.bf16.mxu0 0
        %984 = vmatpush1.bf16.msra.mxu0 %v964
        %985 = vmatprep.subr.bf16.mxu0 0
        %986 = vmatpush1.bf16.msra.mxu0 %v965
        %987 = vmatprep.subr.bf16.mxu0 0
        %988 = vmatpush1.bf16.msra.mxu0 %v966
        %989 = vmatprep.subr.bf16.mxu0 0
        %990 = vmatpush1.bf16.msra.mxu0 %v967
        %991 = vmatprep.subr.bf16.mxu0 0
        %992 = vmatpush1.bf16.msra.mxu0 %v968
        %993 = vmatprep.subr.bf16.mxu0 0
        %994 = vmatpush1.bf16.msra.mxu0 0
        %995 = vmatprep.subr.bf16.mxu0 0
        %996 = vmatpush1.bf16.msra.mxu0 0
        %997 = vmatprep.subr.bf16.mxu0 0
        %998 = vmatpush1.bf16.msra.mxu0 0
        %999 = vmatprep.subr.bf16.mxu0 0
        %1000 = vmatpush1.bf16.msra.mxu0 0
        %1001 = vmatprep.subr.bf16.mxu0 0
        %1002 = vmatpush1.bf16.msra.mxu0 0
        %1003 = vmatprep.subr.bf16.mxu0 0
        %1004 = vmatpush1.bf16.msra.mxu0 0
        %1005 = vmatprep.subr.bf16.mxu0 0
        %1006 = vmatpush1.bf16.msra.mxu0 0
        %1007 = vmatprep.subr.bf16.mxu0 0
        %1008 = vmatpush1.bf16.msra.mxu0 0
        %1009 = vmatprep.mubr.bf16.mxu0 0
        %1010 = vmatmul.mubr.bf16.gmra.mrb[0].mxu0 %v922
        %v1011 = vpop.f32.mrb[0].mxu0
        %v1012 = vadd.f32 %v927, %v1011
        %v1013 = vpop.f32.mrb[0].mxu0
        %v1014 = vpop.f32.mrb[0].mxu0
        %v1015 = vpop.f32.mrb[0].mxu0
        %1016 = vdwg.mxu0
        %1017 = vst [vmem:[%s820] sm:$0xff] %v1012
        %v1018 = vld [vmem:[#allocation6] sm:$0xf]
        %v1019 = vld [vmem:[#allocation6 + $0x4] sm:$0xf]
        %v1020 = vld [vmem:[#allocation6 + $0x8] sm:$0xf]
        %v1021 = vld [vmem:[#allocation6 + $0xc] sm:$0xf]
        %v1022 = vld [vmem:[#allocation7] sm:$0x1]
        %v1024 = vlaneseq
        %v1025 = vshrl.u32 %v1024, 7
        %v1026 = vsub.s32 0, %v1025
        %v1027 = vrot.slane %v1022, %v1026
        %v1033 = vunpack.c.l.b16 %v1018
        %v1034 = vunpack.c.l.b16 %v1019
        %v1035 = vunpack.c.l.b16 %v1020
        %v1036 = vunpack.c.l.b16 %v1021
        %v1037 = vpack.c.b16 %v1034, %v1033
        %v1038 = vpack.c.b16 %v1036, %v1035
        %1041 = vmatprep.subr.bf16.mxu0 0
        %1042 = vmatpush1.bf16.msra.mxu0 %v1037
        %1043 = vmatprep.subr.bf16.mxu0 0
        %1044 = vmatpush1.bf16.msra.mxu0 %v1038
        %1045 = vmatprep.subr.bf16.mxu0 0
        %1046 = vmatpush1.bf16.msra.mxu0 0
        %1047 = vmatprep.subr.bf16.mxu0 0
        %1048 = vmatpush1.bf16.msra.mxu0 0
        %1049 = vmatprep.subr.bf16.mxu0 0
        %1050 = vmatpush1.bf16.msra.mxu0 0
        %1051 = vmatprep.subr.bf16.mxu0 0
        %1052 = vmatpush1.bf16.msra.mxu0 0
        %1053 = vmatprep.subr.bf16.mxu0 0
        %1054 = vmatpush1.bf16.msra.mxu0 0
        %1055 = vmatprep.subr.bf16.mxu0 0
        %1056 = vmatpush1.bf16.msra.mxu0 0
        %1057 = vmatprep.subr.bf16.mxu0 0
        %1058 = vmatpush1.bf16.msra.mxu0 0
        %1059 = vmatprep.subr.bf16.mxu0 0
        %1060 = vmatpush1.bf16.msra.mxu0 0
        %1061 = vmatprep.subr.bf16.mxu0 0
        %1062 = vmatpush1.bf16.msra.mxu0 0
        %1063 = vmatprep.subr.bf16.mxu0 0
        %1064 = vmatpush1.bf16.msra.mxu0 0
        %1065 = vmatprep.subr.bf16.mxu0 0
        %1066 = vmatpush1.bf16.msra.mxu0 0
        %1067 = vmatprep.subr.bf16.mxu0 0
        %1068 = vmatpush1.bf16.msra.mxu0 0
        %1069 = vmatprep.subr.bf16.mxu0 0
        %1070 = vmatpush1.bf16.msra.mxu0 0
        %1071 = vmatprep.subr.bf16.mxu0 0
        %1072 = vmatpush1.bf16.msra.mxu0 0
        %1073 = vmatprep.mubr.bf16.mxu0 0
        %1074 = vmatmul.mubr.bf16.gmra.mrb[0].mxu0 %v862
        %v1075 = vpop.f32.mrb[0].mxu0
        %v1076 = vadd.f32 %v1027, %v1075
        %v1077 = vpop.f32.mrb[0].mxu0
        %v1078 = vpop.f32.mrb[0].mxu0
        %v1079 = vpop.f32.mrb[0].mxu0
        %1080 = vdwg.mxu0
        %v1081 = vmax.f32 %v1076, 0.0
        %v1082 = vld [vmem:[%s10] sm:$0xf]
        %v1083 = vld [vmem:[%s10 + $0x4] sm:$0xf]
        %v1084 = vld [vmem:[%s10 + $0x8] sm:$0xf]
        %v1085 = vld [vmem:[%s10 + $0xc] sm:$0xf]
        %v1086 = vld [vmem:[%s10 + $0x10] sm:$0xf]
        %v1087 = vld [vmem:[%s10 + $0x14] sm:$0xf]
        %v1088 = vld [vmem:[%s10 + $0x18] sm:$0xf]
        %v1089 = vld [vmem:[%s10 + $0x1c] sm:$0xf]
        %v1090 = vld [vmem:[%s10 + $0x20] sm:$0xf]
        %v1091 = vld [vmem:[%s10 + $0x24] sm:$0xf]
        %v1092 = vld [vmem:[%s10 + $0x28] sm:$0xf]
        %v1093 = vld [vmem:[%s10 + $0x2c] sm:$0xf]
        %v1094 = vld [vmem:[%s10 + $0x30] sm:$0xf]
        %v1095 = vld [vmem:[%s10 + $0x34] sm:$0xf]
        %v1096 = vld [vmem:[%s10 + $0x38] sm:$0xf]
        %v1097 = vld [vmem:[%s10 + $0x3c] sm:$0xf]
        %v1098 = vld [vmem:[#allocation9] sm:$0x1]
        %v1099 = vpack.c.bf16 %v1081, %v1081
        %v1101 = vlaneseq
        %v1102 = vshrl.u32 %v1101, 7
        %v1103 = vsub.s32 0, %v1102
        %v1104 = vrot.slane %v1098, %v1103
        %v1122 = vunpack.c.l.b16 %v1082
        %v1123 = vunpack.c.l.b16 %v1083
        %v1124 = vunpack.c.l.b16 %v1084
        %v1125 = vunpack.c.l.b16 %v1085
        %v1126 = vunpack.c.l.b16 %v1086
        %v1127 = vunpack.c.l.b16 %v1087
        %v1128 = vunpack.c.l.b16 %v1088
        %v1129 = vunpack.c.l.b16 %v1089
        %v1130 = vunpack.c.l.b16 %v1090
        %v1131 = vunpack.c.l.b16 %v1091
        %v1132 = vunpack.c.l.b16 %v1092
        %v1133 = vunpack.c.l.b16 %v1093
        %v1134 = vunpack.c.l.b16 %v1094
        %v1135 = vunpack.c.l.b16 %v1095
        %v1136 = vunpack.c.l.b16 %v1096
        %v1137 = vunpack.c.l.b16 %v1097
        %v1138 = vpack.c.b16 %v1123, %v1122
        %v1139 = vpack.c.b16 %v1125, %v1124
        %v1140 = vpack.c.b16 %v1127, %v1126
        %v1141 = vpack.c.b16 %v1129, %v1128
        %v1142 = vpack.c.b16 %v1131, %v1130
        %v1143 = vpack.c.b16 %v1133, %v1132
        %v1144 = vpack.c.b16 %v1135, %v1134
        %v1145 = vpack.c.b16 %v1137, %v1136
        %1154 = vmatprep.subr.bf16.mxu0 0
        %1155 = vmatpush1.bf16.msra.mxu0 %v1138
        %1156 = vmatprep.subr.bf16.mxu0 0
        %1157 = vmatpush1.bf16.msra.mxu0 %v1139
        %1158 = vmatprep.subr.bf16.mxu0 0
        %1159 = vmatpush1.bf16.msra.mxu0 %v1140
        %1160 = vmatprep.subr.bf16.mxu0 0
        %1161 = vmatpush1.bf16.msra.mxu0 %v1141
        %1162 = vmatprep.subr.bf16.mxu0 0
        %1163 = vmatpush1.bf16.msra.mxu0 %v1142
        %1164 = vmatprep.subr.bf16.mxu0 0
        %1165 = vmatpush1.bf16.msra.mxu0 %v1143
        %1166 = vmatprep.subr.bf16.mxu0 0
        %1167 = vmatpush1.bf16.msra.mxu0 %v1144
        %1168 = vmatprep.subr.bf16.mxu0 0
        %1169 = vmatpush1.bf16.msra.mxu0 %v1145
        %1170 = vmatprep.subr.bf16.mxu0 0
        %1171 = vmatpush1.bf16.msra.mxu0 0
        %1172 = vmatprep.subr.bf16.mxu0 0
        %1173 = vmatpush1.bf16.msra.mxu0 0
        %1174 = vmatprep.subr.bf16.mxu0 0
        %1175 = vmatpush1.bf16.msra.mxu0 0
        %1176 = vmatprep.subr.bf16.mxu0 0
        %1177 = vmatpush1.bf16.msra.mxu0 0
        %1178 = vmatprep.subr.bf16.mxu0 0
        %1179 = vmatpush1.bf16.msra.mxu0 0
        %1180 = vmatprep.subr.bf16.mxu0 0
        %1181 = vmatpush1.bf16.msra.mxu0 0
        %1182 = vmatprep.subr.bf16.mxu0 0
        %1183 = vmatpush1.bf16.msra.mxu0 0
        %1184 = vmatprep.subr.bf16.mxu0 0
        %1185 = vmatpush1.bf16.msra.mxu0 0
        %1186 = vmatprep.mubr.bf16.mxu0 0
        %1187 = vmatmul.mubr.bf16.gmra.mrb[0].mxu0 %v1099
        %v1188 = vpop.f32.mrb[0].mxu0
        %v1189 = vadd.f32 %v1104, %v1188
        %v1190 = vpop.f32.mrb[0].mxu0
        %v1191 = vpop.f32.mrb[0].mxu0
        %v1192 = vpop.f32.mrb[0].mxu0
        %1193 = vdwg.mxu0
        %v1194 = vpack.c.bf16 %v1189, %v1189
        %v1195 = vld [vmem:[#allocation10] sm:$0xf]
        %v1196 = vld [vmem:[#allocation10 + $0x4] sm:$0xf]
        %v1197 = vld [vmem:[#allocation10 + $0x8] sm:$0xf]
        %v1198 = vld [vmem:[#allocation10 + $0xc] sm:$0xf]
        %v1199 = vld [vmem:[#allocation10 + $0x10] sm:$0xf]
        %v1200 = vld [vmem:[#allocation10 + $0x14] sm:$0xf]
        %v1201 = vld [vmem:[#allocation10 + $0x18] sm:$0xf]
        %v1202 = vld [vmem:[#allocation10 + $0x1c] sm:$0xf]
        %v1203 = vld [vmem:[#allocation10 + $0x20] sm:$0xf]
        %v1204 = vld [vmem:[#allocation10 + $0x24] sm:$0xf]
        %v1205 = vld [vmem:[#allocation10 + $0x28] sm:$0xf]
        %v1206 = vld [vmem:[#allocation10 + $0x2c] sm:$0xf]
        %v1207 = vld [vmem:[#allocation10 + $0x30] sm:$0xf]
        %v1208 = vld [vmem:[#allocation10 + $0x34] sm:$0xf]
        %v1209 = vld [vmem:[#allocation10 + $0x38] sm:$0xf]
        %v1210 = vld [vmem:[#allocation10 + $0x3c] sm:$0xf]
        %v1211 = vld [vmem:[#allocation12] sm:$0x1]
        %v1213 = vlaneseq
        %v1214 = vshrl.u32 %v1213, 7
        %v1215 = vsub.s32 0, %v1214
        %v1216 = vrot.slane %v1211, %v1215
        %v1234 = vunpack.c.l.b16 %v1195
        %v1235 = vunpack.c.l.b16 %v1196
        %v1236 = vunpack.c.l.b16 %v1197
        %v1237 = vunpack.c.l.b16 %v1198
        %v1238 = vunpack.c.l.b16 %v1199
        %v1239 = vunpack.c.l.b16 %v1200
        %v1240 = vunpack.c.l.b16 %v1201
        %v1241 = vunpack.c.l.b16 %v1202
        %v1242 = vunpack.c.l.b16 %v1203
        %v1243 = vunpack.c.l.b16 %v1204
        %v1244 = vunpack.c.l.b16 %v1205
        %v1245 = vunpack.c.l.b16 %v1206
        %v1246 = vunpack.c.l.b16 %v1207
        %v1247 = vunpack.c.l.b16 %v1208
        %v1248 = vunpack.c.l.b16 %v1209
        %v1249 = vunpack.c.l.b16 %v1210
        %v1250 = vpack.c.b16 %v1235, %v1234
        %v1251 = vpack.c.b16 %v1237, %v1236
        %v1252 = vpack.c.b16 %v1239, %v1238
        %v1253 = vpack.c.b16 %v1241, %v1240
        %v1254 = vpack.c.b16 %v1243, %v1242
        %v1255 = vpack.c.b16 %v1245, %v1244
        %v1256 = vpack.c.b16 %v1247, %v1246
        %v1257 = vpack.c.b16 %v1249, %v1248
        %1266 = vmatprep.subr.bf16.mxu0 0
        %1267 = vmatpush1.bf16.msra.mxu0 %v1250
        %1268 = vmatprep.subr.bf16.mxu0 0
        %1269 = vmatpush1.bf16.msra.mxu0 %v1251
        %1270 = vmatprep.subr.bf16.mxu0 0
        %1271 = vmatpush1.bf16.msra.mxu0 %v1252
        %1272 = vmatprep.subr.bf16.mxu0 0
        %1273 = vmatpush1.bf16.msra.mxu0 %v1253
        %1274 = vmatprep.subr.bf16.mxu0 0
        %1275 = vmatpush1.bf16.msra.mxu0 %v1254
        %1276 = vmatprep.subr.bf16.mxu0 0
        %1277 = vmatpush1.bf16.msra.mxu0 %v1255
        %1278 = vmatprep.subr.bf16.mxu0 0
        %1279 = vmatpush1.bf16.msra.mxu0 %v1256
        %1280 = vmatprep.subr.bf16.mxu0 0
        %1281 = vmatpush1.bf16.msra.mxu0 %v1257
        %1282 = vmatprep.subr.bf16.mxu0 0
        %1283 = vmatpush1.bf16.msra.mxu0 0
        %1284 = vmatprep.subr.bf16.mxu0 0
        %1285 = vmatpush1.bf16.msra.mxu0 0
        %1286 = vmatprep.subr.bf16.mxu0 0
        %1287 = vmatpush1.bf16.msra.mxu0 0
        %1288 = vmatprep.subr.bf16.mxu0 0
        %1289 = vmatpush1.bf16.msra.mxu0 0
        %1290 = vmatprep.subr.bf16.mxu0 0
        %1291 = vmatpush1.bf16.msra.mxu0 0
        %1292 = vmatprep.subr.bf16.mxu0 0
        %1293 = vmatpush1.bf16.msra.mxu0 0
        %1294 = vmatprep.subr.bf16.mxu0 0
        %1295 = vmatpush1.bf16.msra.mxu0 0
        %1296 = vmatprep.subr.bf16.mxu0 0
        %1297 = vmatpush1.bf16.msra.mxu0 0
        %1298 = vmatprep.mubr.bf16.mxu0 0
        %1299 = vmatmul.mubr.bf16.gmra.mrb[0].mxu0 %v1194
        %v1300 = vpop.f32.mrb[0].mxu0
        %v1301 = vadd.f32 %v1216, %v1300
        %v1302 = vpop.f32.mrb[0].mxu0
        %v1303 = vpop.f32.mrb[0].mxu0
        %v1304 = vpop.f32.mrb[0].mxu0
        %1305 = vdwg.mxu0
        %v1306 = vmul.f32 %v1301, %v1301
        %1307 = vadd.xlane.f32.xlu0 %v1306
        %v1308 = vpop.xlane.xlu0 %1307
        %v1309 = vmax.f32 %v1308, 1e-24
        %v1310 = vrsqrt.pop %v1309
        %v1311 = vmul.f32 %v1301, %v1310
        %v1312 = vpack.c.bf16 %v835, %v835
        %v1314 = vsel %vm860, %v1312, 0
        %1316 = vmatprep.subr.bf16.mxu0 0
        %1317 = vmatpush1.bf16.msra.mxu0 %v1037
        %1318 = vmatprep.subr.bf16.mxu0 0
        %1319 = vmatpush1.bf16.msra.mxu0 %v1038
        %1320 = vmatprep.subr.bf16.mxu0 0
        %1321 = vmatpush1.bf16.msra.mxu0 0
        %1322 = vmatprep.subr.bf16.mxu0 0
        %1323 = vmatpush1.bf16.msra.mxu0 0
        %1324 = vmatprep.subr.bf16.mxu0 0
        %1325 = vmatpush1.bf16.msra.mxu0 0
        %1326 = vmatprep.subr.bf16.mxu0 0
        %1327 = vmatpush1.bf16.msra.mxu0 0
        %1328 = vmatprep.subr.bf16.mxu0 0
        %1329 = vmatpush1.bf16.msra.mxu0 0
        %1330 = vmatprep.subr.bf16.mxu0 0
        %1331 = vmatpush1.bf16.msra.mxu0 0
        %1332 = vmatprep.subr.bf16.mxu0 0
        %1333 = vmatpush1.bf16.msra.mxu0 0
        %1334 = vmatprep.subr.bf16.mxu0 0
        %1335 = vmatpush1.bf16.msra.mxu0 0
        %1336 = vmatprep.subr.bf16.mxu0 0
        %1337 = vmatpush1.bf16.msra.mxu0 0
        %1338 = vmatprep.subr.bf16.mxu0 0
        %1339 = vmatpush1.bf16.msra.mxu0 0
        %1340 = vmatprep.subr.bf16.mxu0 0
        %1341 = vmatpush1.bf16.msra.mxu0 0
        %1342 = vmatprep.subr.bf16.mxu0 0
        %1343 = vmatpush1.bf16.msra.mxu0 0
        %1344 = vmatprep.subr.bf16.mxu0 0
        %1345 = vmatpush1.bf16.msra.mxu0 0
        %1346 = vmatprep.subr.bf16.mxu0 0
        %1347 = vmatpush1.bf16.msra.mxu0 0
        %1348 = vmatprep.mubr.bf16.mxu0 0
        %1349 = vmatmul.mubr.bf16.gmra.mrb[0].mxu0 %v1314
        %v1350 = vpop.f32.mrb[0].mxu0
        %v1351 = vadd.f32 %v1027, %v1350
        %v1352 = vpop.f32.mrb[0].mxu0
        %v1353 = vpop.f32.mrb[0].mxu0
        %v1354 = vpop.f32.mrb[0].mxu0
        %1355 = vdwg.mxu0
        %v1356 = vmax.f32 %v1351, 0.0
        %v1357 = vpack.c.bf16 %v1356, %v1356
        %1358 = vmatprep.subr.bf16.mxu0 0
        %1359 = vmatpush1.bf16.msra.mxu0 %v1138
        %1360 = vmatprep.subr.bf16.mxu0 0
        %1361 = vmatpush1.bf16.msra.mxu0 %v1139
        %1362 = vmatprep.subr.bf16.mxu0 0
        %1363 = vmatpush1.bf16.msra.mxu0 %v1140
        %1364 = vmatprep.subr.bf16.mxu0 0
        %1365 = vmatpush1.bf16.msra.mxu0 %v1141
        %1366 = vmatprep.subr.bf16.mxu0 0
        %1367 = vmatpush1.bf16.msra.mxu0 %v1142
        %1368 = vmatprep.subr.bf16.mxu0 0
        %1369 = vmatpush1.bf16.msra.mxu0 %v1143
        %1370 = vmatprep.subr.bf16.mxu0 0
        %1371 = vmatpush1.bf16.msra.mxu0 %v1144
        %1372 = vmatprep.subr.bf16.mxu0 0
        %1373 = vmatpush1.bf16.msra.mxu0 %v1145
        %1374 = vmatprep.subr.bf16.mxu0 0
        %1375 = vmatpush1.bf16.msra.mxu0 0
        %1376 = vmatprep.subr.bf16.mxu0 0
        %1377 = vmatpush1.bf16.msra.mxu0 0
        %1378 = vmatprep.subr.bf16.mxu0 0
        %1379 = vmatpush1.bf16.msra.mxu0 0
        %1380 = vmatprep.subr.bf16.mxu0 0
        %1381 = vmatpush1.bf16.msra.mxu0 0
        %1382 = vmatprep.subr.bf16.mxu0 0
        %1383 = vmatpush1.bf16.msra.mxu0 0
        %1384 = vmatprep.subr.bf16.mxu0 0
        %1385 = vmatpush1.bf16.msra.mxu0 0
        %1386 = vmatprep.subr.bf16.mxu0 0
        %1387 = vmatpush1.bf16.msra.mxu0 0
        %1388 = vmatprep.subr.bf16.mxu0 0
        %1389 = vmatpush1.bf16.msra.mxu0 0
        %1390 = vmatprep.mubr.bf16.mxu0 0
        %1391 = vmatmul.mubr.bf16.gmra.mrb[0].mxu0 %v1357
        %v1392 = vpop.f32.mrb[0].mxu0
        %v1393 = vadd.f32 %v1104, %v1392
        %v1394 = vpop.f32.mrb[0].mxu0
        %v1395 = vpop.f32.mrb[0].mxu0
        %v1396 = vpop.f32.mrb[0].mxu0
        %1397 = vdwg.mxu0
        %v1398 = vpack.c.bf16 %v1393, %v1393
        %v1399 = vld [vmem:[#allocation13] sm:$0xf]
        %v1400 = vld [vmem:[#allocation13 + $0x4] sm:$0xf]
        %v1401 = vld [vmem:[#allocation13 + $0x8] sm:$0xf]
        %v1402 = vld [vmem:[#allocation13 + $0xc] sm:$0xf]
        %v1403 = vld [vmem:[#allocation13 + $0x10] sm:$0xf]
        %v1404 = vld [vmem:[#allocation13 + $0x14] sm:$0xf]
        %v1405 = vld [vmem:[#allocation13 + $0x18] sm:$0xf]
        %v1406 = vld [vmem:[#allocation13 + $0x1c] sm:$0xf]
        %v1407 = vld [vmem:[#allocation13 + $0x20] sm:$0xf]
        %v1408 = vld [vmem:[#allocation13 + $0x24] sm:$0xf]
        %v1409 = vld [vmem:[#allocation13 + $0x28] sm:$0xf]
        %v1410 = vld [vmem:[#allocation13 + $0x2c] sm:$0xf]
        %v1411 = vld [vmem:[#allocation13 + $0x30] sm:$0xf]
        %v1412 = vld [vmem:[#allocation13 + $0x34] sm:$0xf]
        %v1413 = vld [vmem:[#allocation13 + $0x38] sm:$0xf]
        %v1414 = vld [vmem:[#allocation13 + $0x3c] sm:$0xf]
        %v1415 = vld [vmem:[#allocation15] sm:$0x1]
        %v1417 = vlaneseq
        %v1418 = vshrl.u32 %v1417, 7
        %v1419 = vsub.s32 0, %v1418
        %v1420 = vrot.slane %v1415, %v1419
        %v1438 = vunpack.c.l.b16 %v1399
        %v1439 = vunpack.c.l.b16 %v1400
        %v1440 = vunpack.c.l.b16 %v1401
        %v1441 = vunpack.c.l.b16 %v1402
        %v1442 = vunpack.c.l.b16 %v1403
        %v1443 = vunpack.c.l.b16 %v1404
        %v1444 = vunpack.c.l.b16 %v1405
        %v1445 = vunpack.c.l.b16 %v1406
        %v1446 = vunpack.c.l.b16 %v1407
        %v1447 = vunpack.c.l.b16 %v1408
        %v1448 = vunpack.c.l.b16 %v1409
        %v1449 = vunpack.c.l.b16 %v1410
        %v1450 = vunpack.c.l.b16 %v1411
        %v1451 = vunpack.c.l.b16 %v1412
        %v1452 = vunpack.c.l.b16 %v1413
        %v1453 = vunpack.c.l.b16 %v1414
        %v1454 = vpack.c.b16 %v1439, %v1438
        %v1455 = vpack.c.b16 %v1441, %v1440
        %v1456 = vpack.c.b16 %v1443, %v1442
        %v1457 = vpack.c.b16 %v1445, %v1444
        %v1458 = vpack.c.b16 %v1447, %v1446
        %v1459 = vpack.c.b16 %v1449, %v1448
        %v1460 = vpack.c.b16 %v1451, %v1450
        %v1461 = vpack.c.b16 %v1453, %v1452
        %1470 = vmatprep.subr.bf16.mxu0 0
        %1471 = vmatpush1.bf16.msra.mxu0 %v1454
        %1472 = vmatprep.subr.bf16.mxu0 0
        %1473 = vmatpush1.bf16.msra.mxu0 %v1455
        %1474 = vmatprep.subr.bf16.mxu0 0
        %1475 = vmatpush1.bf16.msra.mxu0 %v1456
        %1476 = vmatprep.subr.bf16.mxu0 0
        %1477 = vmatpush1.bf16.msra.mxu0 %v1457
        %1478 = vmatprep.subr.bf16.mxu0 0
        %1479 = vmatpush1.bf16.msra.mxu0 %v1458
        %1480 = vmatprep.subr.bf16.mxu0 0
        %1481 = vmatpush1.bf16.msra.mxu0 %v1459
        %1482 = vmatprep.subr.bf16.mxu0 0
        %1483 = vmatpush1.bf16.msra.mxu0 %v1460
        %1484 = vmatprep.subr.bf16.mxu0 0
        %1485 = vmatpush1.bf16.msra.mxu0 %v1461
        %1486 = vmatprep.subr.bf16.mxu0 0
        %1487 = vmatpush1.bf16.msra.mxu0 0
        %1488 = vmatprep.subr.bf16.mxu0 0
        %1489 = vmatpush1.bf16.msra.mxu0 0
        %1490 = vmatprep.subr.bf16.mxu0 0
        %1491 = vmatpush1.bf16.msra.mxu0 0
        %1492 = vmatprep.subr.bf16.mxu0 0
        %1493 = vmatpush1.bf16.msra.mxu0 0
        %1494 = vmatprep.subr.bf16.mxu0 0
        %1495 = vmatpush1.bf16.msra.mxu0 0
        %1496 = vmatprep.subr.bf16.mxu0 0
        %1497 = vmatpush1.bf16.msra.mxu0 0
        %1498 = vmatprep.subr.bf16.mxu0 0
        %1499 = vmatpush1.bf16.msra.mxu0 0
        %1500 = vmatprep.subr.bf16.mxu0 0
        %1501 = vmatpush1.bf16.msra.mxu0 0
        %1502 = vmatprep.mubr.bf16.mxu0 0
        %1503 = vmatmul.mubr.bf16.gmra.mrb[0].mxu0 %v1398
        %v1504 = vpop.f32.mrb[0].mxu0
        %v1505 = vadd.f32 %v1420, %v1504
        %v1506 = vpop.f32.mrb[0].mxu0
        %v1507 = vpop.f32.mrb[0].mxu0
        %v1508 = vpop.f32.mrb[0].mxu0
        %1509 = vdwg.mxu0
        %v1510 = vmul.f32 %v1505, %v1505
        %1511 = vadd.xlane.f32.xlu0 %v1510
        %v1512 = vpop.xlane.xlu0 %1511
        %v1513 = vmax.f32 %v1512, 1e-24
        %v1514 = vrsqrt.pop %v1513
        %v1515 = vmul.f32 %v1505, %v1514
        %v1516 = vadd.f32 %v1311, %v1515
        %1517 = vst [vmem:[%s824] sm:$0xff] %v1516
        %p1518 = scmp.lt.s32.totalorder %s34, 1
        %s1519 = scalar_select %p1518, %s34, 1
        %s1520 = smul.addr %s1519, 8
        %s1521 = scalar_lea.vmem %s16, %s1520
        %p1522 = scmp.lt.s32.totalorder %s34, 1
        %s1523 = scalar_select %p1522, %s34, 1
        %s1524 = smul.addr %s1523, 8
        %s1525 = scalar_lea.vmem %s17, %s1524
        // Predicated region
        $region121: #{forward.1} parent=83 // pred_check
          %p1526 = pneg %p436
        $region122: #{forward.1} parent=83 // pred_check_branch
          %1528 = sbr.rel (%p1526) target = $region124
        $region123: #{forward.1} parent=83 // pred_region
          _
        $region124: #{forward.1} parent=83 // pred_fallthru
          _
        // Predicated region
        $region125: #{forward.1} parent=83 // pred_check
          %p1529 = pneg %p462
        $region126: #{forward.1} parent=83 // pred_check_branch
          %1531 = sbr.rel (%p1529) target = $region128
        $region127: #{forward.1} parent=83 // pred_region
          _
        $region128: #{forward.1} parent=83 // pred_fallthru
          _
      $region84: #{forward.1} parent=5 // pred_fallthru
        _
      %p1532 = scmp.le.s32.totalorder 2, %s29
      // Predicated region
      $region129: #{forward.1} parent=5 // pred_check
        %p1533 = pneg %p1532
      $region130: #{forward.1} parent=5 // pred_check_branch
        %1535 = sbr.rel (%p1533) target = $region132
      $region131: #{forward.1} parent=5 // pred_region
        %s1536 = ssub.s32 %s29, 2
        // Predicated region
        $region133: #{forward.1} parent=131 // pred_check
          %p1537 = pneg %p442
        $region134: #{forward.1} parent=131 // pred_check_branch
          %1539 = sbr.rel (%p1537) target = $region136
        $region135: #{forward.1} parent=131 // pred_region
          %p1540 = scmp.lt.s32.totalorder %s35, 1
          %s1541 = scalar_select %p1540, %s35, 1
          %s1542 = smul.addr %s1541, 8
          %s1543 = scalar_lea.vmem %s16, %s1542
        $region136: #{forward.1} parent=131 // pred_fallthru
          _
        // Predicated region
        $region137: #{forward.1} parent=131 // pred_check
          %p1544 = pneg %p468
        $region138: #{forward.1} parent=131 // pred_check_branch
          %1546 = sbr.rel (%p1544) target = $region140
        $region139: #{forward.1} parent=131 // pred_region
          %p1547 = scmp.lt.s32.totalorder %s35, 1
          %s1548 = scalar_select %p1547, %s35, 1
          %s1549 = smul.addr %s1548, 8
          %s1550 = scalar_lea.vmem %s17, %s1549
        $region140: #{forward.1} parent=131 // pred_fallthru
          _
      $region132: #{forward.1} parent=5 // pred_fallthru
        _
    $region6: #{forward.1} parent=1 // loop_footer
      %s33 = sadd.s32 1, %s29
    $region7: #{forward.1} parent=1 // loop_footer_branch
      %28 = sbr.rel target = $region3
    $region8: #{forward.1} parent=1 // loop_exit
      _
    %1551 = vsyncpa [#allocation3], 1
    %s1552 = scalar_lea.sflag [#allocation3], 1
    %1553 = vsyncpa %s1552, 1
    %1554 = vsyncpa [#allocation5], 1
    %1555 = vsyncpa [#allocation8], 1
    %1556 = vsyncpa [#allocation11], 1
    %1557 = vsyncpa [#allocation14], 1

</llo_original>
